<compile_context>
chip_gen: v7x
topology: tpu7x:2x2x1
jax: 0.10.0
libtpu: 0.0.40
codegen_flags: <defaults>
</compile_context>

<pallas_src>
import jax
import jax.numpy as jnp
from jax import lax
from jax.experimental import pallas as pl
from jax.experimental.pallas import tpu as pltpu


def _round_up(a, b):
    return (a + b - 1) // b * b


def make_attention_kernel(heads, dim_head, tn):
    hidden = heads * dim_head

    def kernel(x_ref, g_ref, wqkv_ref, wout_ref, bout_ref, o_ref, s_acc):
        phase = pl.program_id(1)   # 0: accumulate k^T v, 1: produce output
        tile = pl.program_id(2)

        @pl.when(jnp.logical_and(phase == 0, tile == 0))
        def _():
            s_acc[...] = jnp.zeros_like(s_acc)

        x = x_ref[0].astype(jnp.float32)                          # (C, tn)

        # RMSNorm: F.normalize(x, dim=channel) * g * sqrt(C)  (sqrt(C) folded
        # into g host-side; eps clamp identical to torch F.normalize).
        nrm = jnp.sqrt(jnp.sum(x * x, axis=0, keepdims=True))     # (1, tn)
        xn = x / jnp.maximum(nrm, 1e-12) * g_ref[...]             # (C, tn)

        w = wqkv_ref[...]                                         # (3*hidden, C)

        @pl.when(phase == 0)
        def _():
            # k, v for this tile:  (2*hidden, tn)
            kv = jnp.dot(w[hidden:], xn, preferred_element_type=jnp.float32)
            k3 = kv[:hidden].reshape(heads, dim_head, tn)         # (h, dh, tn)
            v3 = kv[hidden:].reshape(heads, dim_head, tn)         # (h, dh, tn)
            # S_h[dv, dk] += sum_t v_h[dv, t] * k_h[dk, t]   (head-batched)
            s_acc[...] += lax.dot_general(
                v3, k3, (((2,), (2,)), ((0,), (0,))),
                preferred_element_type=jnp.float32)               # (h, dh, dh)

        @pl.when(phase == 1)
        def _():
            # q for this tile (scale already folded into the q rows of Wqkv)
            q3 = jnp.dot(w[:hidden], xn,
                         preferred_element_type=jnp.float32
                         ).reshape(heads, dim_head, tn)           # (h, dh, tn)
            # out_h = S_h @ q_h   == (q @ k^T) @ v of the reference (no softmax)
            o3 = lax.dot_general(
                s_acc[...], q3, (((2,), (1,)), ((0,), (0,))),
                preferred_element_type=jnp.float32)               # (h, dh, tn)
            o2 = o3.reshape(hidden, tn)                           # (h d) row order
            # to_out (1x1x1 conv with bias) + residual
            y = jnp.dot(wout_ref[...], o2, preferred_element_type=jnp.float32)
            o_ref[0] = (y + bout_ref[...] + x).astype(o_ref.dtype)

    return kernel


def attention_forward(x, g, w_qkv, w_out, b_out, heads=4, dim_head=32,
                      tn_max=512):
    b, c, H, W, D = x.shape
    N = H * W * D
    hidden = heads * dim_head
    scale = dim_head ** -0.5

    # channels-first, spatial flattened; N on the lane dim (no transposes).
    x_cn = x.reshape(b, c, N)

    # Pad N up to a lane-aligned multiple of the tile. Zero columns are inert:
    # they normalize to 0, contribute 0 to k^T v, and are sliced off at the end.
    Np = _round_up(N, 128)
    tn = Np if Np <= tn_max else tn_max
    Np = _round_up(Np, tn)
    if Np != N:
        x_cn = jnp.pad(x_cn, ((0, 0), (0, 0), (0, Np - N)))
    n_tiles = Np // tn

    # Host-side folds: attention scale into q rows of Wqkv, sqrt(C) into g.
    wqkv = w_qkv.reshape(3 * hidden, c).astype(jnp.float32)
    wqkv = wqkv.at[:hidden].multiply(scale)
    wout = w_out.reshape(c, hidden).astype(jnp.float32)
    g_v = (g.reshape(c, 1) * (c ** 0.5)).astype(jnp.float32)
    bout = b_out.reshape(c, 1).astype(jnp.float32)

    kernel = make_attention_kernel(heads, dim_head, tn)

    out = pl.pallas_call(
        kernel,
        out_shape=jax.ShapeDtypeStruct((b, c, Np), x.dtype),
        grid_spec=pltpu.PrefetchScalarGridSpec(
            num_scalar_prefetch=0,
            grid=(b, 2, n_tiles),                 # (batch, phase, N-tiles)
            in_specs=[
                pl.BlockSpec((1, c, tn), lambda bi, ph, ti: (bi, 0, ti)),
                pl.BlockSpec((c, 1), lambda bi, ph, ti: (0, 0)),
                pl.BlockSpec((3 * hidden, c), lambda bi, ph, ti: (0, 0)),
                pl.BlockSpec((c, hidden), lambda bi, ph, ti: (0, 0)),
                pl.BlockSpec((c, 1), lambda bi, ph, ti: (0, 0)),
            ],
            # Phase 0 never writes: park the output block at tile 0 so nothing
            # is flushed; phase 1 writes each tile exactly once (lane-dense).
            out_specs=pl.BlockSpec((1, c, tn),
                                   lambda bi, ph, ti: (bi, 0, ti * ph)),
            scratch_shapes=[pltpu.VMEM((heads, dim_head, dim_head),
                                       jnp.float32)],
        ),
        compiler_params=pltpu.CompilerParams(
            dimension_semantics=("parallel", "arbitrary", "arbitrary")),
    )(x_cn, g_v, wqkv, wout, bout)

    return out[:, :, :N].reshape(b, c, H, W, D)


def attention_ref(x, g, w_qkv, w_out, b_out, heads=4, dim_head=32):
    """Pure-JAX reference mirroring the PyTorch forward (incl. attn = sim)."""
    b, c, H, W, D = x.shape
    N = H * W * D
    hidden = heads * dim_head
    scale = dim_head ** -0.5

    nrm = jnp.sqrt(jnp.sum(x * x, axis=1, keepdims=True))
    xn = x / jnp.maximum(nrm, 1e-12) * g * (c ** 0.5)

    wq = w_qkv.reshape(3 * hidden, c)
    qkv = jnp.einsum('oc,bcxyz->boxyz', wq, xn).reshape(b, 3, heads, dim_head, N)
    q, k, v = qkv[:, 0], qkv[:, 1], qkv[:, 2]                 # (b, heads, dh, N)
    q = q * scale
    sim = jnp.einsum('bhdi,bhdj->bhij', q, k)
    attn = sim                                                # no softmax
    out = jnp.einsum('bhij,bhdj->bhid', attn, v)              # (b, heads, N, dh)
    out = out.transpose(0, 1, 3, 2).reshape(b, hidden, H, W, D)
    wo = w_out.reshape(c, hidden)
    y = jnp.einsum('oc,bcxyz->boxyz', wo, out) + b_out.reshape(1, c, 1, 1, 1) + x
    return y


if __name__ == "__main__":
    dim, heads, dim_head = 4, 4, 32
    hidden = heads * dim_head
    b, H, W, D = 2, 4, 4, 4

    key = jax.random.PRNGKey(0)
    k1, k2, k3, k4 = jax.random.split(key, 4)
    x = jax.random.normal(k1, (b, dim, H, W, D), jnp.float32)
    # parameters (deterministic, matching PyTorch module shapes)
    g = jnp.ones((1, dim, 1, 1, 1), jnp.float32)                        # RMSNorm.g
    w_qkv = jax.random.normal(k2, (3 * hidden, dim, 1, 1, 1), jnp.float32) * 0.1
    w_out = jax.random.normal(k3, (dim, hidden, 1, 1, 1), jnp.float32) * 0.1
    b_out = jax.random.normal(k4, (dim,), jnp.float32) * 0.1

    out = attention_forward(x, g, w_qkv, w_out, b_out, heads, dim_head)
    jax.block_until_ready(out)

    ref = attention_ref(x, g, w_qkv, w_out, b_out, heads, dim_head)
    err = float(jnp.max(jnp.abs(out - ref)))
    assert jnp.allclose(out, ref, rtol=1e-3, atol=1e-3), f"max abs err {err}"
    print("KERNEL_OK")
</pallas_src>

<mosaic_0001>
module attributes {stable_mosaic.version = 11 : i64} {
  func.func @kernel(%arg0: i32, %arg1: i32, %arg2: i32, %arg3: memref<1x4x128xf32, #tpu.memory_space<vmem>>, %arg4: memref<4x1xf32, #tpu.memory_space<vmem>>, %arg5: memref<384x4xf32, #tpu.memory_space<vmem>>, %arg6: memref<4x128xf32, #tpu.memory_space<vmem>>, %arg7: memref<4x1xf32, #tpu.memory_space<vmem>>, %arg8: memref<1x4x128xf32, #tpu.memory_space<vmem>>, %arg9: memref<4x32x32xf32, #tpu.memory_space<vmem>>) attributes {dimension_semantics = [#tpu.dimension_semantics<parallel>, #tpu.dimension_semantics<arbitrary>, #tpu.dimension_semantics<arbitrary>], iteration_bounds = array<i64: 2, 2, 1>, scalar_prefetch = 0 : i64, scratch_operands = 1 : i64, tpu.core_type = #tpu.core_type<tc>, window_params = [{transform_indices = @transform_0, window_bounds = array<i64: 1, 4, 128>}, {pipeline_mode = #tpu.pipeline_mode<synchronous>, transform_indices = @transform_1, window_bounds = array<i64: 4, 1>}, {pipeline_mode = #tpu.pipeline_mode<synchronous>, transform_indices = @transform_2, window_bounds = array<i64: 384, 4>}, {pipeline_mode = #tpu.pipeline_mode<synchronous>, transform_indices = @transform_3, window_bounds = array<i64: 4, 128>}, {pipeline_mode = #tpu.pipeline_mode<synchronous>, transform_indices = @transform_4, window_bounds = array<i64: 4, 1>}, {transform_indices = @transform_5, window_bounds = array<i64: 1, 4, 128>}]} {
    %c0_i32 = arith.constant 0 : i32
    %0 = arith.cmpi eq, %arg1, %c0_i32 : i32
    %c0_i32_0 = arith.constant 0 : i32
    %1 = arith.cmpi eq, %arg2, %c0_i32_0 : i32
    %2 = arith.andi %0, %1 : i1
    %3 = arith.extui %2 : i1 to i32
    %c0_i32_1 = arith.constant 0 : i32
    %4 = arith.cmpi ne, %3, %c0_i32_1 : i32
    scf.if %4 {
      %cst_12 = arith.constant 0.000000e+00 : f32
      %25 = vector.broadcast %cst_12 : f32 to vector<4x32x32xf32>
      %c0_13 = arith.constant 0 : index
      %c0_14 = arith.constant 0 : index
      %c0_15 = arith.constant 0 : index
      %26 = vector.load %arg9[%c0_13, %c0_14, %c0_15] : memref<4x32x32xf32, #tpu.memory_space<vmem>>, vector<4x32x32xf32>
      tpu.vector_store %arg9[%c0_13, %c0_14, %c0_15], %25 {strides = array<i32>} : memref<4x32x32xf32, #tpu.memory_space<vmem>>, vector<4x32x32xf32>,
    } else {
    }
    %c0 = arith.constant 0 : index
    %c0_2 = arith.constant 0 : index
    %c0_3 = arith.constant 0 : index
    %5 = vector.load %arg3[%c0, %c0_2, %c0_3] : memref<1x4x128xf32, #tpu.memory_space<vmem>>, vector<1x4x128xf32>
    %6 = vector.shape_cast %5 : vector<1x4x128xf32> to vector<4x128xf32>
    %7 = arith.mulf %6, %6 : vector<4x128xf32>
    %cst = arith.constant dense<0.000000e+00> : vector<128xf32>
    %8 = vector.multi_reduction <add>, %7, %cst [0] : vector<4x128xf32> to vector<128xf32>
    %9 = vector.shape_cast %8 : vector<128xf32> to vector<1x128xf32>
    %10 = math.sqrt %9 : vector<1x128xf32>
    %cst_4 = arith.constant 9.99999996E-13 : f32
    %11 = vector.broadcast %cst_4 : f32 to vector<1x128xf32>
    %12 = arith.maximumf %10, %11 : vector<1x128xf32>
    %13 = vector.broadcast %12 : vector<1x128xf32> to vector<4x128xf32>
    %14 = arith.divf %6, %13 : vector<4x128xf32>
    %c0_5 = arith.constant 0 : index
    %c0_6 = arith.constant 0 : index
    %15 = vector.load %arg4[%c0_5, %c0_6] : memref<4x1xf32, #tpu.memory_space<vmem>>, vector<4x1xf32>
    %16 = vector.broadcast %15 : vector<4x1xf32> to vector<4x128xf32>
    %17 = arith.mulf %14, %16 : vector<4x128xf32>
    %c0_7 = arith.constant 0 : index
    %c0_8 = arith.constant 0 : index
    %18 = vector.load %arg5[%c0_7, %c0_8] : memref<384x4xf32, #tpu.memory_space<vmem>>, vector<384x4xf32>
    %c0_i32_9 = arith.constant 0 : i32
    %19 = arith.cmpi eq, %arg1, %c0_i32_9 : i32
    %20 = arith.extui %19 : i1 to i32
    %c0_i32_10 = arith.constant 0 : i32
    %21 = arith.cmpi ne, %20, %c0_i32_10 : i32
    scf.if %21 {
      %25 = vector.extract_strided_slice %18 {offsets = [128, 0], sizes = [256, 4], strides = [1, 1]} : vector<384x4xf32> to vector<256x4xf32>
      %cst_12 = arith.constant dense<0.000000e+00> : vector<256x128xf32>
      %26 = tpu.matmul %25, %17, %cst_12 {dimension_numbers = #tpu.dot_dimension_numbers<[1], [0], [0], [1], [0, 0, 1, 1], [], []>} : vector<256x4xf32>, vector<4x128xf32>, vector<256x128xf32> -> vector<256x128xf32>
      %27 = vector.extract_strided_slice %26 {offsets = [0, 0], sizes = [128, 128], strides = [1, 1]} : vector<256x128xf32> to vector<128x128xf32>
      %28 = vector.shape_cast %27 : vector<128x128xf32> to vector<4x32x128xf32>
      %29 = vector.extract_strided_slice %26 {offsets = [128, 0], sizes = [128, 128], strides = [1, 1]} : vector<256x128xf32> to vector<128x128xf32>
      %30 = vector.shape_cast %29 : vector<128x128xf32> to vector<4x32x128xf32>
      %c0_13 = arith.constant 0 : index
      %c0_14 = arith.constant 0 : index
      %c0_15 = arith.constant 0 : index
      %31 = vector.load %arg9[%c0_13, %c0_14, %c0_15] : memref<4x32x32xf32, #tpu.memory_space<vmem>>, vector<4x32x32xf32>
      %cst_16 = arith.constant dense<0.000000e+00> : vector<4x32x32xf32>
      %32 = tpu.matmul %30, %28, %cst_16 {dimension_numbers = #tpu.dot_dimension_numbers<[2], [2], [1], [1], [0, 0, 0, 1, 1, 1], [0], [0]>} : vector<4x32x128xf32>, vector<4x32x128xf32>, vector<4x32x32xf32> -> vector<4x32x32xf32>
      %33 = arith.addf %31, %32 : vector<4x32x32xf32>
      %c0_17 = arith.constant 0 : index
      %c0_18 = arith.constant 0 : index
      %c0_19 = arith.constant 0 : index
      %34 = vector.load %arg9[%c0_17, %c0_18, %c0_19] : memref<4x32x32xf32, #tpu.memory_space<vmem>>, vector<4x32x32xf32>
      tpu.vector_store %arg9[%c0_17, %c0_18, %c0_19], %33 {strides = array<i32>} : memref<4x32x32xf32, #tpu.memory_space<vmem>>, vector<4x32x32xf32>,
    } else {
    }
    %c1_i32 = arith.constant 1 : i32
    %22 = arith.cmpi eq, %arg1, %c1_i32 : i32
    %23 = arith.extui %22 : i1 to i32
    %c0_i32_11 = arith.constant 0 : i32
    %24 = arith.cmpi ne, %23, %c0_i32_11 : i32
    scf.if %24 {
      %25 = vector.extract_strided_slice %18 {offsets = [0, 0], sizes = [128, 4], strides = [1, 1]} : vector<384x4xf32> to vector<128x4xf32>
      %cst_12 = arith.constant dense<0.000000e+00> : vector<128x128xf32>
      %26 = tpu.matmul %25, %17, %cst_12 {dimension_numbers = #tpu.dot_dimension_numbers<[1], [0], [0], [1], [0, 0, 1, 1], [], []>} : vector<128x4xf32>, vector<4x128xf32>, vector<128x128xf32> -> vector<128x128xf32>
      %27 = vector.shape_cast %26 : vector<128x128xf32> to vector<4x32x128xf32>
      %c0_13 = arith.constant 0 : index
      %c0_14 = arith.constant 0 : index
      %c0_15 = arith.constant 0 : index
      %28 = vector.load %arg9[%c0_13, %c0_14, %c0_15] : memref<4x32x32xf32, #tpu.memory_space<vmem>>, vector<4x32x32xf32>
      %cst_16 = arith.constant dense<0.000000e+00> : vector<4x32x128xf32>
      %29 = tpu.matmul %28, %27, %cst_16 {dimension_numbers = #tpu.dot_dimension_numbers<[2], [1], [1], [2], [0, 0, 0, 1, 1, 2], [0], [0]>} : vector<4x32x32xf32>, vector<4x32x128xf32>, vector<4x32x128xf32> -> vector<4x32x128xf32>
      %30 = vector.shape_cast %29 : vector<4x32x128xf32> to vector<128x128xf32>
      %c0_17 = arith.constant 0 : index
      %c0_18 = arith.constant 0 : index
      %31 = vector.load %arg6[%c0_17, %c0_18] : memref<4x128xf32, #tpu.memory_space<vmem>>, vector<4x128xf32>
      %cst_19 = arith.constant dense<0.000000e+00> : vector<4x128xf32>
      %32 = tpu.matmul %31, %30, %cst_19 {dimension_numbers = #tpu.dot_dimension_numbers<[1], [0], [0], [1], [0, 0, 1, 1], [], []>} : vector<4x128xf32>, vector<128x128xf32>, vector<4x128xf32> -> vector<4x128xf32>
      %c0_20 = arith.constant 0 : index
      %c0_21 = arith.constant 0 : index
      %33 = vector.load %arg7[%c0_20, %c0_21] : memref<4x1xf32, #tpu.memory_space<vmem>>, vector<4x1xf32>
      %34 = vector.broadcast %33 : vector<4x1xf32> to vector<4x128xf32>
      %35 = arith.addf %32, %34 : vector<4x128xf32>
      %36 = arith.addf %35, %6 : vector<4x128xf32>
      %c0_22 = arith.constant 0 : index
      %c0_23 = arith.constant 0 : index
      %c0_24 = arith.constant 0 : index
      %37 = vector.load %arg8[%c0_22, %c0_23, %c0_24] : memref<1x4x128xf32, #tpu.memory_space<vmem>>, vector<1x4x128xf32>
      %38 = vector.shape_cast %37 : vector<1x4x128xf32> to vector<4x128xf32>
      %39 = vector.shape_cast %36 : vector<4x128xf32> to vector<1x4x128xf32>
      tpu.vector_store %arg8[%c0_22, %c0_23, %c0_24], %39 {strides = array<i32>} : memref<1x4x128xf32, #tpu.memory_space<vmem>>, vector<1x4x128xf32>,
    } else {
    }
    return
  }
  func.func @transform_0(%arg0: i32, %arg1: i32, %arg2: i32) -> (i32, i32, i32) {
    %c0_i32 = arith.constant 0 : i32
    %c0_i32_0 = arith.constant 0 : i32
    return %arg0, %c0_i32, %arg2 : i32, i32, i32
  }
  func.func @transform_1(%arg0: i32, %arg1: i32, %arg2: i32) -> (i32, i32) {
    %c0_i32 = arith.constant 0 : i32
    %c0_i32_0 = arith.constant 0 : i32
    %c0_i32_1 = arith.constant 0 : i32
    return %c0_i32, %c0_i32_0 : i32, i32
  }
  func.func @transform_2(%arg0: i32, %arg1: i32, %arg2: i32) -> (i32, i32) {
    %c0_i32 = arith.constant 0 : i32
    %c0_i32_0 = arith.constant 0 : i32
    %c0_i32_1 = arith.constant 0 : i32
    return %c0_i32, %c0_i32_0 : i32, i32
  }
  func.func @transform_3(%arg0: i32, %arg1: i32, %arg2: i32) -> (i32, i32) {
    %c0_i32 = arith.constant 0 : i32
    %c0_i32_0 = arith.constant 0 : i32
    %c0_i32_1 = arith.constant 0 : i32
    return %c0_i32, %c0_i32_0 : i32, i32
  }
  func.func @transform_4(%arg0: i32, %arg1: i32, %arg2: i32) -> (i32, i32) {
    %c0_i32 = arith.constant 0 : i32
    %c0_i32_0 = arith.constant 0 : i32
    %c0_i32_1 = arith.constant 0 : i32
    return %c0_i32, %c0_i32_0 : i32, i32
  }
  func.func @transform_5(%arg0: i32, %arg1: i32, %arg2: i32) -> (i32, i32, i32) {
    %0 = arith.muli %arg2, %arg1 : i32
    %c0_i32 = arith.constant 0 : i32
    %c0_i32_0 = arith.constant 0 : i32
    return %arg0, %c0_i32, %0 : i32, i32, i32
  }
}

</mosaic_0001>

<llo_original>
// kernel: tpu_custom_call.1
$region0: #{tpu_custom_call.1}
  #allocation0 [shape = 'u32[]', space=smem, size = 0x4, offset = 0x4, fixed_abs, tag = 'smem constant byte address 0x4 - core index']
  #allocation1 [shape = 'u32[144,128]{1,0:T(1,128)}', space=vmem, size = 0x12000, scoped, tag = 'internal scratch']
  #allocation2 [shape = 'f32[4,32,32]{2,1,0:T(8,128)}', space=vmem, size = 0x10000, scoped, tag = 'scratch operand']
  %s0 = inlined_call_operand.vmem [shape: f32[2,4,128], index: 0, kind: input, shape index: {}]
  %s1 = inlined_call_operand.vmem [shape: f32[4,1], index: 1, kind: input, shape index: {}]
  %s2 = inlined_call_operand.vmem [shape: f32[384,4], index: 2, kind: input, shape index: {}]
  %s3 = inlined_call_operand.vmem [shape: f32[4,128], index: 3, kind: input, shape index: {}]
  %s4 = inlined_call_operand.vmem [shape: f32[4,1], index: 4, kind: input, shape index: {}]
  %s5 = inlined_call_operand.hbm [shape: f32[2,4,128], index: 5, kind: output, shape index: {}]
  %s6 = sld [smem:[#allocation0]]
  $region65: #{tpu_custom_call.1} parent=0
    _
  %s8 = ssub.s32 1, %s6
  %s9 = scalar_select 0, %s8, %s6
  $region1: #{tpu_custom_call.1} parent=0
    #allocation3 [shape = 'u8[4096]{0}', space=vmem, size = 0x1000, scoped, tag = 'output window, operand 0']
    #allocation4 [shape = 's32[2]{0}', space=sflag, size = 0x8, scoped, tag = 'scoped memory for tpu_custom_call.1']
    %10 = vsyncpa [#allocation4], 0
    %s11 = scalar_lea.sflag [#allocation4], 1
    %12 = vsyncpa %s11, 0
    loop: start=0, step=1, limit=6
    $region2: #{tpu_custom_call.1} parent=1 // loop_pre_header
      _
    $region3: #{tpu_custom_call.1} parent=1 // loop_header
      %s14 = sphi 0, %s18
      %p15 = scmp.ge.s32.totalorder %s14, 6
      %s21 = sphi 0, %s40
      %s22 = sphi 0, %s36
      %s23 = sphi 0, %s32
      %s24 = sphi 0, %s21
      %s25 = sphi 0, %s22
      %s26 = sphi 0, %s23
      %s27 = sphi 0, %s24
      %s28 = sphi 0, %s25
      %s29 = sphi 0, %s26
      %s45 = sphi 0, %s47
      %s48 = sphi 0, %s45
      %s49 = sphi 0, %s48
      %s65 = sphi 0, %s49
      %s69 = sphi 0, %s69
      %s71 = sphi 0, %s69
      %s72 = sphi 0, %s71
      %s86 = sphi 0, %s72
      %s90 = sphi 0, %s90
      %s92 = sphi 0, %s90
      %s93 = sphi 0, %s92
      %s107 = sphi 0, %s93
      %s111 = sphi 0, %s111
      %s113 = sphi 0, %s111
      %s114 = sphi 0, %s113
      %s128 = sphi 0, %s114
      %s132 = sphi 0, %s132
      %s134 = sphi 0, %s132
      %s135 = sphi 0, %s134
      %s149 = sphi 0, %s135
      %s159 = sphi 0, %s161
      %s162 = sphi 0, %s159
      %s163 = sphi 0, %s162
      %s179 = sphi 0, %s163
    $region4: #{tpu_custom_call.1} parent=1 // loop_header_branch
      %17 = sbr.rel (%p15) target = $region8
    $region5: #{tpu_custom_call.1} parent=1 // loop_body
      %s19 = ssub.s32 %s14, 1
      %s20 = ssub.s32 %s14, 2
      %s30 = sadd.s32 1, %s23
      %p31 = scmp.ge.s32.totalorder %s30, 1
      %s32 = scalar_select %p31, 0, %s30
      %s33 = sadd.s32 1, %s22
      %s34 = scalar_select %p31, %s33, %s22
      %p35 = scmp.ge.s32.totalorder %s34, 2
      %s36 = scalar_select %p35, 0, %s34
      %s37 = sadd.s32 1, %s21
      %s38 = scalar_select %p35, %s37, %s21
      %p39 = scmp.ge.s32.totalorder %s38, 2
      %s40 = scalar_select %p39, 0, %s38
      %s41 = ssub.s32 %s21, %s40
      %s42 = ssub.s32 %s23, %s32
      %s43 = sor.u32 %s41, %s42
      %p44 = scmp.eq.s32.totalorder %s43, 0
      %s46 = sadd.s32 %s45, 1
      %s47 = scalar_select %p44, %s45, %s46
      %p50 = pneg %p44
      %p51 = scmp.eq.s32.totalorder %s14, 3
      %p52 = por %p50, %p51
      %p53 = scmp.ne.s32.totalorder %s45, %s48
      %p54 = scmp.eq.s32.totalorder %s14, 0
      %p55 = por %p53, %p54
      %p56 = scmp.ne.s32.totalorder %s45, %s48
      %p57 = scmp.eq.s32.totalorder %s19, 3
      %p58 = por %p56, %p57
      %p59 = scmp.ne.s32.totalorder %s48, %s49
      %p60 = scmp.eq.s32.totalorder %s19, 0
      %p61 = por %p59, %p60
      %p62 = scmp.ne.s32.totalorder %s48, %s49
      %p63 = scmp.eq.s32.totalorder %s20, 3
      %p64 = por %p62, %p63
      %p66 = scmp.ne.s32.totalorder %s49, %s65
      %p67 = scmp.eq.s32.totalorder %s20, 0
      %p68 = por %p66, %p67
      %s70 = sadd.s32 %s69, 1
      %p73 = scmp.eq.s32.totalorder %s14, 3
      %p74 = scmp.ne.s32.totalorder %s69, %s71
      %p75 = scmp.eq.s32.totalorder %s14, 0
      %p76 = por %p74, %p75
      %p77 = scmp.ne.s32.totalorder %s69, %s71
      %p78 = scmp.eq.s32.totalorder %s19, 3
      %p79 = por %p77, %p78
      %p80 = scmp.ne.s32.totalorder %s71, %s72
      %p81 = scmp.eq.s32.totalorder %s19, 0
      %p82 = por %p80, %p81
      %p83 = scmp.ne.s32.totalorder %s71, %s72
      %p84 = scmp.eq.s32.totalorder %s20, 3
      %p85 = por %p83, %p84
      %p87 = scmp.ne.s32.totalorder %s72, %s86
      %p88 = scmp.eq.s32.totalorder %s20, 0
      %p89 = por %p87, %p88
      %s91 = sadd.s32 %s90, 1
      %p94 = scmp.eq.s32.totalorder %s14, 3
      %p95 = scmp.ne.s32.totalorder %s90, %s92
      %p96 = scmp.eq.s32.totalorder %s14, 0
      %p97 = por %p95, %p96
      %p98 = scmp.ne.s32.totalorder %s90, %s92
      %p99 = scmp.eq.s32.totalorder %s19, 3
      %p100 = por %p98, %p99
      %p101 = scmp.ne.s32.totalorder %s92, %s93
      %p102 = scmp.eq.s32.totalorder %s19, 0
      %p103 = por %p101, %p102
      %p104 = scmp.ne.s32.totalorder %s92, %s93
      %p105 = scmp.eq.s32.totalorder %s20, 3
      %p106 = por %p104, %p105
      %p108 = scmp.ne.s32.totalorder %s93, %s107
      %p109 = scmp.eq.s32.totalorder %s20, 0
      %p110 = por %p108, %p109
      %s112 = sadd.s32 %s111, 1
      %p115 = scmp.eq.s32.totalorder %s14, 3
      %p116 = scmp.ne.s32.totalorder %s111, %s113
      %p117 = scmp.eq.s32.totalorder %s14, 0
      %p118 = por %p116, %p117
      %p119 = scmp.ne.s32.totalorder %s111, %s113
      %p120 = scmp.eq.s32.totalorder %s19, 3
      %p121 = por %p119, %p120
      %p122 = scmp.ne.s32.totalorder %s113, %s114
      %p123 = scmp.eq.s32.totalorder %s19, 0
      %p124 = por %p122, %p123
      %p125 = scmp.ne.s32.totalorder %s113, %s114
      %p126 = scmp.eq.s32.totalorder %s20, 3
      %p127 = por %p125, %p126
      %p129 = scmp.ne.s32.totalorder %s114, %s128
      %p130 = scmp.eq.s32.totalorder %s20, 0
      %p131 = por %p129, %p130
      %s133 = sadd.s32 %s132, 1
      %p136 = scmp.eq.s32.totalorder %s14, 3
      %p137 = scmp.ne.s32.totalorder %s132, %s134
      %p138 = scmp.eq.s32.totalorder %s14, 0
      %p139 = por %p137, %p138
      %p140 = scmp.ne.s32.totalorder %s132, %s134
      %p141 = scmp.eq.s32.totalorder %s19, 3
      %p142 = por %p140, %p141
      %p143 = scmp.ne.s32.totalorder %s134, %s135
      %p144 = scmp.eq.s32.totalorder %s19, 0
      %p145 = por %p143, %p144
      %p146 = scmp.ne.s32.totalorder %s134, %s135
      %p147 = scmp.eq.s32.totalorder %s20, 3
      %p148 = por %p146, %p147
      %p150 = scmp.ne.s32.totalorder %s135, %s149
      %p151 = scmp.eq.s32.totalorder %s20, 0
      %p152 = por %p150, %p151
      %s153 = smul.u32 %s23, %s22
      %s154 = smul.u32 %s32, %s36
      %s155 = ssub.s32 %s21, %s40
      %s156 = ssub.s32 %s153, %s154
      %s157 = sor.u32 %s155, %s156
      %p158 = scmp.eq.s32.totalorder %s157, 0
      %s160 = sadd.s32 %s159, 1
      %s161 = scalar_select %p158, %s159, %s160
      %p164 = pneg %p158
      %p165 = scmp.eq.s32.totalorder %s14, 3
      %p166 = por %p164, %p165
      %p167 = scmp.ne.s32.totalorder %s159, %s162
      %p168 = scmp.eq.s32.totalorder %s14, 0
      %p169 = por %p167, %p168
      %p170 = scmp.ne.s32.totalorder %s159, %s162
      %p171 = scmp.eq.s32.totalorder %s19, 3
      %p172 = por %p170, %p171
      %p173 = scmp.ne.s32.totalorder %s162, %s163
      %p174 = scmp.eq.s32.totalorder %s19, 0
      %p175 = por %p173, %p174
      %p176 = scmp.ne.s32.totalorder %s162, %s163
      %p177 = scmp.eq.s32.totalorder %s20, 3
      %p178 = por %p176, %p177
      %p180 = scmp.ne.s32.totalorder %s163, %s179
      %p181 = scmp.eq.s32.totalorder %s20, 0
      %p182 = por %p180, %p181
      %p183 = scmp.le.s32.totalorder 1, %s14
      %p184 = scmp.lt.s32.totalorder %s14, 5
      %p185 = pnand %p183, %p184
      %p186 = pneg %p185
      // Predicated region
      $region9: #{tpu_custom_call.1} parent=5 // pred_check
        _
      $region10: #{tpu_custom_call.1} parent=5 // pred_check_branch
        %188 = sbr.rel (%p185) target = $region12
      $region11: #{tpu_custom_call.1} parent=5 // pred_region
        %s189 = ssub.s32 %s14, 1
        // Predicated region
        $region13: #{tpu_custom_call.1} parent=11 // pred_check
          %p190 = pneg %p82
        $region14: #{tpu_custom_call.1} parent=11 // pred_check_branch
          %192 = sbr.rel (%p190) target = $region16
        $region15: #{tpu_custom_call.1} parent=11 // pred_region
          _
        $region16: #{tpu_custom_call.1} parent=11 // pred_fallthru
          _
        // Predicated region
        $region17: #{tpu_custom_call.1} parent=11 // pred_check
          %p193 = pneg %p103
        $region18: #{tpu_custom_call.1} parent=11 // pred_check_branch
          %195 = sbr.rel (%p193) target = $region20
        $region19: #{tpu_custom_call.1} parent=11 // pred_region
          _
        $region20: #{tpu_custom_call.1} parent=11 // pred_fallthru
          _
        // Predicated region
        $region21: #{tpu_custom_call.1} parent=11 // pred_check
          %p196 = pneg %p124
        $region22: #{tpu_custom_call.1} parent=11 // pred_check_branch
          %198 = sbr.rel (%p196) target = $region24
        $region23: #{tpu_custom_call.1} parent=11 // pred_region
          _
        $region24: #{tpu_custom_call.1} parent=11 // pred_fallthru
          _
        // Predicated region
        $region25: #{tpu_custom_call.1} parent=11 // pred_check
          %p199 = pneg %p145
        $region26: #{tpu_custom_call.1} parent=11 // pred_check_branch
          %201 = sbr.rel (%p199) target = $region28
        $region27: #{tpu_custom_call.1} parent=11 // pred_region
          _
        $region28: #{tpu_custom_call.1} parent=11 // pred_fallthru
          _
      $region12: #{tpu_custom_call.1} parent=5 // pred_fallthru
        _
      %p202 = scmp.lt.s32.totalorder %s14, 4
      // Predicated region
      $region29: #{tpu_custom_call.1} parent=5 // pred_check
        %p203 = pneg %p202
      $region30: #{tpu_custom_call.1} parent=5 // pred_check_branch
        %205 = sbr.rel (%p203) target = $region32
      $region31: #{tpu_custom_call.1} parent=5 // pred_region
        // Predicated region
        $region33: #{tpu_custom_call.1} parent=31 // pred_check
          %p206 = pneg %p55
        $region34: #{tpu_custom_call.1} parent=31 // pred_check_branch
          %208 = sbr.rel (%p206) target = $region36
        $region35: #{tpu_custom_call.1} parent=31 // pred_region
          %p209 = scmp.lt.s32.totalorder %s21, 1
          %s210 = scalar_select %p209, %s21, 1
          %p211 = scmp.lt.s32.totalorder %s23, 0
          %s212 = scalar_select %p211, %s23, 0
          %s213 = sadd.s32 %s212, %s210
          %s214 = smul.addr %s213, 4
          %s215 = scalar_lea.vmem %s0, %s214
        $region36: #{tpu_custom_call.1} parent=31 // pred_fallthru
          _
      $region32: #{tpu_custom_call.1} parent=5 // pred_fallthru
        _
      %p216 = scmp.le.s32.totalorder 1, %s14
      %p217 = scmp.lt.s32.totalorder %s14, 5
      %p218 = pnand %p216, %p217
      %p219 = pneg %p218
      // Predicated region
      $region37: #{tpu_custom_call.1} parent=5 // pred_check
        _
      $region38: #{tpu_custom_call.1} parent=5 // pred_check_branch
        %221 = sbr.rel (%p218) target = $region40
      $region39: #{tpu_custom_call.1} parent=5 // pred_region
        %s222 = ssub.s32 %s14, 1
        %p223 = scmp.lt.s32.totalorder %s24, 1
        %s224 = scalar_select %p223, %s24, 1
        %p225 = scmp.lt.s32.totalorder %s26, 0
        %s226 = scalar_select %p225, %s26, 0
        %s227 = sadd.s32 %s226, %s224
        %s228 = smul.addr %s227, 4
        %s229 = scalar_lea.vmem %s0, %s228
        %p230 = pneg %p61
        %p231 = pneg %p58
        %p232 = pneg %p82
        %p233 = pneg %p79
        %p234 = pneg %p103
        %p235 = pneg %p100
        %p236 = pneg %p124
        %p237 = pneg %p121
        %p238 = pneg %p145
        %p239 = pneg %p142
        %p240 = pneg %p175
        %p241 = pneg %p172
        %s242 = sand.u32 %s162, 1
        %s243 = scalar_lea.sflag [#allocation4], %s242
        %s244 = sand.u32 %s162, 1
        %s245 = smul.addr %s244, 4
        %s246 = scalar_lea.vmem [#allocation3], %s245
        %p247 = scmp.lt.s32.totalorder %s24, 1
        %s248 = scalar_select %p247, %s24, 1
        %p249 = scmp.lt.s32.totalorder %s26, 0
        %s250 = scalar_select %p249, %s26, 0
        %s251 = sadd.s32 %s250, %s248
        %s252 = smul.addr %s251, 4
        %s253 = scalar_lea.vmem %s0, %s252
        %s254 = smul.u32 %s26, %s25
        %p255 = scmp.eq.s32.totalorder %s25, 0
        %p256 = scmp.eq.s32.totalorder %s26, 0
        %p257 = pnand %p255, %p256
        %p258 = pneg %p257
        // Predicated region
        $region41: #{tpu_custom_call.1} parent=39 // pred_check
          _
        $region42: #{tpu_custom_call.1} parent=39 // pred_check_branch
          %260 = sbr.rel (%p257) target = $region44
        $region43: #{tpu_custom_call.1} parent=39 // pred_region
          %vm261 = vcmask 261120
          %262 = vst.msk [vmem:[#allocation2] sm:$0xff] %vm261, 0.0
          %263 = vst.msk [vmem:[#allocation2 + $0x8] sm:$0xff] %vm261, 0.0
          %264 = vst.msk [vmem:[#allocation2 + $0x10] sm:$0xff] %vm261, 0.0
          %265 = vst.msk [vmem:[#allocation2 + $0x18] sm:$0xff] %vm261, 0.0
          %266 = vst.msk [vmem:[#allocation2 + $0x20] sm:$0xff] %vm261, 0.0
          %267 = vst.msk [vmem:[#allocation2 + $0x28] sm:$0xff] %vm261, 0.0
          %268 = vst.msk [vmem:[#allocation2 + $0x30] sm:$0xff] %vm261, 0.0
          %269 = vst.msk [vmem:[#allocation2 + $0x38] sm:$0xff] %vm261, 0.0
          %270 = vst.msk [vmem:[#allocation2 + $0x40] sm:$0xff] %vm261, 0.0
          %271 = vst.msk [vmem:[#allocation2 + $0x48] sm:$0xff] %vm261, 0.0
          %272 = vst.msk [vmem:[#allocation2 + $0x50] sm:$0xff] %vm261, 0.0
          %273 = vst.msk [vmem:[#allocation2 + $0x58] sm:$0xff] %vm261, 0.0
          %274 = vst.msk [vmem:[#allocation2 + $0x60] sm:$0xff] %vm261, 0.0
          %275 = vst.msk [vmem:[#allocation2 + $0x68] sm:$0xff] %vm261, 0.0
          %276 = vst.msk [vmem:[#allocation2 + $0x70] sm:$0xff] %vm261, 0.0
          %277 = vst.msk [vmem:[#allocation2 + $0x78] sm:$0xff] %vm261, 0.0
        $region44: #{tpu_custom_call.1} parent=39 // pred_fallthru
          _
        %v278 = vld [vmem:[%s253] sm:$0xf]
        %v279 = vmul.f32 %v278, %v278
        %vm280 = vcmask 1043456
        %v281 = vsel %vm280, %v279, 0.0
        %v282 = vrot.slane %v281, 4
        %v283 = vadd.f32 %v281, %v282
        %v284 = vrot.slane %v283, 2
        %v285 = vadd.f32 %v283, %v284
        %v286 = vrot.slane %v285, 1
        %v287 = vadd.f32 %v285, %v286
        %v288 = vrsqrt.pop %v287
        %v289 = vmul.f32 %v287, %v288
        %vm290 = vcmp.eq.f32.partialorder %v287, inf
        %v291 = vsel %vm290, %v287, %v289
        %vm292 = vcmp.eq.f32.partialorder %v287, 0.0
        %v293 = vand.u32 %v287, 2147483648
        %v294 = vsel %vm292, %v293, %v291
        %v295 = vmax.f32 %v294, 1e-12
        %v296 = vrcp.pop %v295
        %v297 = vmul.f32 %v278, %v296
        %v298 = vld [vmem:[%s1] sm:$0xf]
        %300 = vset.pattern.permute.xlu0 0
        %301 = vperm.xlu0 %300, %v298
        %v302 = vpop.permute.xlu0 %301
        %v304 = vmul.f32 %v297, %v302
        %v305 = vld [vmem:[%s2] sm:$0xff]
        %v306 = vld [vmem:[%s2 + $0x8] sm:$0xff]
        %v307 = vld [vmem:[%s2 + $0x10] sm:$0xff]
        %v308 = vld [vmem:[%s2 + $0x18] sm:$0xff]
        %v309 = vld [vmem:[%s2 + $0x20] sm:$0xff]
        %v310 = vld [vmem:[%s2 + $0x28] sm:$0xff]
        %v311 = vld [vmem:[%s2 + $0x30] sm:$0xff]
        %v312 = vld [vmem:[%s2 + $0x38] sm:$0xff]
        %v313 = vld [vmem:[%s2 + $0x40] sm:$0xff]
        %v314 = vld [vmem:[%s2 + $0x48] sm:$0xff]
        %v315 = vld [vmem:[%s2 + $0x50] sm:$0xff]
        %v316 = vld [vmem:[%s2 + $0x58] sm:$0xff]
        %v317 = vld [vmem:[%s2 + $0x60] sm:$0xff]
        %v318 = vld [vmem:[%s2 + $0x68] sm:$0xff]
        %v319 = vld [vmem:[%s2 + $0x70] sm:$0xff]
        %v320 = vld [vmem:[%s2 + $0x78] sm:$0xff]
        %v321 = vld [vmem:[%s2 + $0x80] sm:$0xff]
        %v322 = vld [vmem:[%s2 + $0x88] sm:$0xff]
        %v323 = vld [vmem:[%s2 + $0x90] sm:$0xff]
        %v324 = vld [vmem:[%s2 + $0x98] sm:$0xff]
        %v325 = vld [vmem:[%s2 + $0xa0] sm:$0xff]
        %v326 = vld [vmem:[%s2 + $0xa8] sm:$0xff]
        %v327 = vld [vmem:[%s2 + $0xb0] sm:$0xff]
        %v328 = vld [vmem:[%s2 + $0xb8] sm:$0xff]
        %v329 = vld [vmem:[%s2 + $0xc0] sm:$0xff]
        %v330 = vld [vmem:[%s2 + $0xc8] sm:$0xff]
        %v331 = vld [vmem:[%s2 + $0xd0] sm:$0xff]
        %v332 = vld [vmem:[%s2 + $0xd8] sm:$0xff]
        %v333 = vld [vmem:[%s2 + $0xe0] sm:$0xff]
        %v334 = vld [vmem:[%s2 + $0xe8] sm:$0xff]
        %v335 = vld [vmem:[%s2 + $0xf0] sm:$0xff]
        %v336 = vld [vmem:[%s2 + $0xf8] sm:$0xff]
        %v337 = vld [vmem:[%s2 + $0x100] sm:$0xff]
        %v338 = vld [vmem:[%s2 + $0x108] sm:$0xff]
        %v339 = vld [vmem:[%s2 + $0x110] sm:$0xff]
        %v340 = vld [vmem:[%s2 + $0x118] sm:$0xff]
        %v341 = vld [vmem:[%s2 + $0x120] sm:$0xff]
        %v342 = vld [vmem:[%s2 + $0x128] sm:$0xff]
        %v343 = vld [vmem:[%s2 + $0x130] sm:$0xff]
        %v344 = vld [vmem:[%s2 + $0x138] sm:$0xff]
        %v345 = vld [vmem:[%s2 + $0x140] sm:$0xff]
        %v346 = vld [vmem:[%s2 + $0x148] sm:$0xff]
        %v347 = vld [vmem:[%s2 + $0x150] sm:$0xff]
        %v348 = vld [vmem:[%s2 + $0x158] sm:$0xff]
        %v349 = vld [vmem:[%s2 + $0x160] sm:$0xff]
        %v350 = vld [vmem:[%s2 + $0x168] sm:$0xff]
        %v351 = vld [vmem:[%s2 + $0x170] sm:$0xff]
        %v352 = vld [vmem:[%s2 + $0x178] sm:$0xff]
        // Predicated region
        $region45: #{tpu_custom_call.1} parent=39 // pred_check
          %p353 = pneg %p255
        $region46: #{tpu_custom_call.1} parent=39 // pred_check_branch
          %355 = sbr.rel (%p353) target = $region48
        $region47: #{tpu_custom_call.1} parent=39 // pred_region
          %vm356 = vcmask 31744
          %v358 = vsel %vm356, %v321, 0
          %v361 = vsel %vm356, %v322, 0
          %v364 = vsel %vm356, %v323, 0
          %v367 = vsel %vm356, %v324, 0
          %v370 = vsel %vm356, %v325, 0
          %v373 = vsel %vm356, %v326, 0
          %v376 = vsel %vm356, %v327, 0
          %v379 = vsel %vm356, %v328, 0
          %v382 = vsel %vm356, %v329, 0
          %v385 = vsel %vm356, %v330, 0
          %v388 = vsel %vm356, %v331, 0
          %v391 = vsel %vm356, %v332, 0
          %v394 = vsel %vm356, %v333, 0
          %v397 = vsel %vm356, %v334, 0
          %v400 = vsel %vm356, %v335, 0
          %v403 = vsel %vm356, %v336, 0
          %v406 = vsel %vm356, %v337, 0
          %v409 = vsel %vm356, %v338, 0
          %v412 = vsel %vm356, %v339, 0
          %v415 = vsel %vm356, %v340, 0
          %v418 = vsel %vm356, %v341, 0
          %v421 = vsel %vm356, %v342, 0
          %v424 = vsel %vm356, %v343, 0
          %v427 = vsel %vm356, %v344, 0
          %v430 = vsel %vm356, %v345, 0
          %v433 = vsel %vm356, %v346, 0
          %v436 = vsel %vm356, %v347, 0
          %v439 = vsel %vm356, %v348, 0
          %v442 = vsel %vm356, %v349, 0
          %v445 = vsel %vm356, %v350, 0
          %v448 = vsel %vm356, %v351, 0
          %v451 = vsel %vm356, %v352, 0
          %v454 = vsel %vm280, %v304, 0
          %456 = vmatprep.subr.mxu0 0.0
          %457 = vmatpush1.msra.mxu0 %v454
          %458 = vmatprep.subr.mxu0 0.0
          %459 = vmatpush1.msra.mxu0 0.0
          %460 = vmatprep.subr.mxu0 0.0
          %461 = vmatpush1.msra.mxu0 0.0
          %462 = vmatprep.subr.mxu0 0.0
          %463 = vmatpush1.msra.mxu0 0.0
          %464 = vmatprep.subr.mxu0 0.0
          %465 = vmatpush1.msra.mxu0 0.0
          %466 = vmatprep.subr.mxu0 0.0
          %467 = vmatpush1.msra.mxu0 0.0
          %468 = vmatprep.subr.mxu0 0.0
          %469 = vmatpush1.msra.mxu0 0.0
          %470 = vmatprep.subr.mxu0 0.0
          %471 = vmatpush1.msra.mxu0 0.0
          %472 = vmatprep.subr.mxu0 0.0
          %473 = vmatpush1.msra.mxu0 0.0
          %474 = vmatprep.subr.mxu0 0.0
          %475 = vmatpush1.msra.mxu0 0.0
          %476 = vmatprep.subr.mxu0 0.0
          %477 = vmatpush1.msra.mxu0 0.0
          %478 = vmatprep.subr.mxu0 0.0
          %479 = vmatpush1.msra.mxu0 0.0
          %480 = vmatprep.subr.mxu0 0.0
          %481 = vmatpush1.msra.mxu0 0.0
          %482 = vmatprep.subr.mxu0 0.0
          %483 = vmatpush1.msra.mxu0 0.0
          %484 = vmatprep.subr.mxu0 0.0
          %485 = vmatpush1.msra.mxu0 0.0
          %486 = vmatprep.subr.mxu0 0.0
          %487 = vmatpush1.msra.mxu0 0.0
          %488 = vmatprep.subr.mxu0 0.0
          %489 = vmatpush1.msra.mxu0 0.0
          %490 = vmatprep.subr.mxu0 0.0
          %491 = vmatpush1.msra.mxu0 0.0
          %492 = vmatprep.subr.mxu0 0.0
          %493 = vmatpush1.msra.mxu0 0.0
          %494 = vmatprep.subr.mxu0 0.0
          %495 = vmatpush1.msra.mxu0 0.0
          %496 = vmatprep.subr.mxu0 0.0
          %497 = vmatpush1.msra.mxu0 0.0
          %498 = vmatprep.subr.mxu0 0.0
          %499 = vmatpush1.msra.mxu0 0.0
          %500 = vmatprep.subr.mxu0 0.0
          %501 = vmatpush1.msra.mxu0 0.0
          %502 = vmatprep.subr.mxu0 0.0
          %503 = vmatpush1.msra.mxu0 0.0
          %504 = vmatprep.subr.mxu0 0.0
          %505 = vmatpush1.msra.mxu0 0.0
          %506 = vmatprep.subr.mxu0 0.0
          %507 = vmatpush1.msra.mxu0 0.0
          %508 = vmatprep.subr.mxu0 0.0
          %509 = vmatpush1.msra.mxu0 0.0
          %510 = vmatprep.subr.mxu0 0.0
          %511 = vmatpush1.msra.mxu0 0.0
          %512 = vmatprep.subr.mxu0 0.0
          %513 = vmatpush1.msra.mxu0 0.0
          %514 = vmatprep.subr.mxu0 0.0
          %515 = vmatpush1.msra.mxu0 0.0
          %516 = vmatprep.subr.mxu0 0.0
          %517 = vmatpush1.msra.mxu0 0.0
          %518 = vmatprep.subr.mxu0 0.0
          %519 = vmatpush1.msra.mxu0 0.0
          %520 = vmatprep.mubr.f32.mxu0 0.0
          %521 = vmatmul.mubr.f32.gmra.mrb[0].mxu0 %v358
          %v522 = vpop.f32.mrb[0].mxu0
          %v523 = vadd.f32 0.0, %v522
          %v524 = vpop.f32.mrb[0].mxu0
          %525 = vmatprep.mubr.f32.mxu0 0.0
          %526 = vmatmul.mubr.f32.gmra.mrb[0].mxu0 %v361
          %v527 = vpop.f32.mrb[0].mxu0
          %v528 = vadd.f32 0.0, %v527
          %v529 = vpop.f32.mrb[0].mxu0
          %530 = vmatprep.mubr.f32.mxu0 0.0
          %531 = vmatmul.mubr.f32.gmra.mrb[0].mxu0 %v364
          %v532 = vpop.f32.mrb[0].mxu0
          %v533 = vadd.f32 0.0, %v532
          %v534 = vpop.f32.mrb[0].mxu0
          %535 = vmatprep.mubr.f32.mxu0 0.0
          %536 = vmatmul.mubr.f32.gmra.mrb[0].mxu0 %v367
          %v537 = vpop.f32.mrb[0].mxu0
          %v538 = vadd.f32 0.0, %v537
          %v539 = vpop.f32.mrb[0].mxu0
          %540 = vmatprep.mubr.f32.mxu0 0.0
          %541 = vmatmul.mubr.f32.gmra.mrb[0].mxu0 %v370
          %v542 = vpop.f32.mrb[0].mxu0
          %v543 = vadd.f32 0.0, %v542
          %v544 = vpop.f32.mrb[0].mxu0
          %545 = vmatprep.mubr.f32.mxu0 0.0
          %546 = vmatmul.mubr.f32.gmra.mrb[0].mxu0 %v373
          %v547 = vpop.f32.mrb[0].mxu0
          %v548 = vadd.f32 0.0, %v547
          %v549 = vpop.f32.mrb[0].mxu0
          %550 = vmatprep.mubr.f32.mxu0 0.0
          %551 = vmatmul.mubr.f32.gmra.mrb[0].mxu0 %v376
          %v552 = vpop.f32.mrb[0].mxu0
          %v553 = vadd.f32 0.0, %v552
          %v554 = vpop.f32.mrb[0].mxu0
          %555 = vmatprep.mubr.f32.mxu0 0.0
          %556 = vmatmul.mubr.f32.gmra.mrb[0].mxu0 %v379
          %v557 = vpop.f32.mrb[0].mxu0
          %v558 = vadd.f32 0.0, %v557
          %v559 = vpop.f32.mrb[0].mxu0
          %560 = vmatprep.mubr.f32.mxu0 0.0
          %561 = vmatmul.mubr.f32.gmra.mrb[0].mxu0 %v382
          %v562 = vpop.f32.mrb[0].mxu0
          %v563 = vadd.f32 0.0, %v562
          %v564 = vpop.f32.mrb[0].mxu0
          %565 = vmatprep.mubr.f32.mxu0 0.0
          %566 = vmatmul.mubr.f32.gmra.mrb[0].mxu0 %v385
          %v567 = vpop.f32.mrb[0].mxu0
          %v568 = vadd.f32 0.0, %v567
          %v569 = vpop.f32.mrb[0].mxu0
          %570 = vmatprep.mubr.f32.mxu0 0.0
          %571 = vmatmul.mubr.f32.gmra.mrb[0].mxu0 %v388
          %v572 = vpop.f32.mrb[0].mxu0
          %v573 = vadd.f32 0.0, %v572
          %v574 = vpop.f32.mrb[0].mxu0
          %575 = vmatprep.mubr.f32.mxu0 0.0
          %576 = vmatmul.mubr.f32.gmra.mrb[0].mxu0 %v391
          %v577 = vpop.f32.mrb[0].mxu0
          %v578 = vadd.f32 0.0, %v577
          %v579 = vpop.f32.mrb[0].mxu0
          %580 = vmatprep.mubr.f32.mxu0 0.0
          %581 = vmatmul.mubr.f32.gmra.mrb[0].mxu0 %v394
          %v582 = vpop.f32.mrb[0].mxu0
          %v583 = vadd.f32 0.0, %v582
          %v584 = vpop.f32.mrb[0].mxu0
          %585 = vmatprep.mubr.f32.mxu0 0.0
          %586 = vmatmul.mubr.f32.gmra.mrb[0].mxu0 %v397
          %v587 = vpop.f32.mrb[0].mxu0
          %v588 = vadd.f32 0.0, %v587
          %v589 = vpop.f32.mrb[0].mxu0
          %590 = vmatprep.mubr.f32.mxu0 0.0
          %591 = vmatmul.mubr.f32.gmra.mrb[0].mxu0 %v400
          %v592 = vpop.f32.mrb[0].mxu0
          %v593 = vadd.f32 0.0, %v592
          %v594 = vpop.f32.mrb[0].mxu0
          %595 = vmatprep.mubr.f32.mxu0 0.0
          %596 = vmatmul.mubr.f32.gmra.mrb[0].mxu0 %v403
          %v597 = vpop.f32.mrb[0].mxu0
          %v598 = vadd.f32 0.0, %v597
          %v599 = vpop.f32.mrb[0].mxu0
          %600 = vmatprep.mubr.f32.mxu0 0.0
          %601 = vmatmul.mubr.f32.gmra.mrb[0].mxu0 %v406
          %v602 = vpop.f32.mrb[0].mxu0
          %v603 = vadd.f32 0.0, %v602
          %v604 = vpop.f32.mrb[0].mxu0
          %605 = vmatprep.mubr.f32.mxu0 0.0
          %606 = vmatmul.mubr.f32.gmra.mrb[0].mxu0 %v409
          %v607 = vpop.f32.mrb[0].mxu0
          %v608 = vadd.f32 0.0, %v607
          %v609 = vpop.f32.mrb[0].mxu0
          %610 = vmatprep.mubr.f32.mxu0 0.0
          %611 = vmatmul.mubr.f32.gmra.mrb[0].mxu0 %v412
          %v612 = vpop.f32.mrb[0].mxu0
          %v613 = vadd.f32 0.0, %v612
          %v614 = vpop.f32.mrb[0].mxu0
          %615 = vmatprep.mubr.f32.mxu0 0.0
          %616 = vmatmul.mubr.f32.gmra.mrb[0].mxu0 %v415
          %v617 = vpop.f32.mrb[0].mxu0
          %v618 = vadd.f32 0.0, %v617
          %v619 = vpop.f32.mrb[0].mxu0
          %620 = vmatprep.mubr.f32.mxu0 0.0
          %621 = vmatmul.mubr.f32.gmra.mrb[0].mxu0 %v418
          %v622 = vpop.f32.mrb[0].mxu0
          %v623 = vadd.f32 0.0, %v622
          %v624 = vpop.f32.mrb[0].mxu0
          %625 = vmatprep.mubr.f32.mxu0 0.0
          %626 = vmatmul.mubr.f32.gmra.mrb[0].mxu0 %v421
          %v627 = vpop.f32.mrb[0].mxu0
          %v628 = vadd.f32 0.0, %v627
          %v629 = vpop.f32.mrb[0].mxu0
          %630 = vmatprep.mubr.f32.mxu0 0.0
          %631 = vmatmul.mubr.f32.gmra.mrb[0].mxu0 %v424
          %v632 = vpop.f32.mrb[0].mxu0
          %v633 = vadd.f32 0.0, %v632
          %v634 = vpop.f32.mrb[0].mxu0
          %635 = vmatprep.mubr.f32.mxu0 0.0
          %636 = vmatmul.mubr.f32.gmra.mrb[0].mxu0 %v427
          %v637 = vpop.f32.mrb[0].mxu0
          %v638 = vadd.f32 0.0, %v637
          %v639 = vpop.f32.mrb[0].mxu0
          %640 = vmatprep.mubr.f32.mxu0 0.0
          %641 = vmatmul.mubr.f32.gmra.mrb[0].mxu0 %v430
          %v642 = vpop.f32.mrb[0].mxu0
          %v643 = vadd.f32 0.0, %v642
          %v644 = vpop.f32.mrb[0].mxu0
          %645 = vmatprep.mubr.f32.mxu0 0.0
          %646 = vmatmul.mubr.f32.gmra.mrb[0].mxu0 %v433
          %v647 = vpop.f32.mrb[0].mxu0
          %v648 = vadd.f32 0.0, %v647
          %v649 = vpop.f32.mrb[0].mxu0
          %650 = vmatprep.mubr.f32.mxu0 0.0
          %651 = vmatmul.mubr.f32.gmra.mrb[0].mxu0 %v436
          %v652 = vpop.f32.mrb[0].mxu0
          %v653 = vadd.f32 0.0, %v652
          %v654 = vpop.f32.mrb[0].mxu0
          %655 = vmatprep.mubr.f32.mxu0 0.0
          %656 = vmatmul.mubr.f32.gmra.mrb[0].mxu0 %v439
          %v657 = vpop.f32.mrb[0].mxu0
          %v658 = vadd.f32 0.0, %v657
          %v659 = vpop.f32.mrb[0].mxu0
          %660 = vmatprep.mubr.f32.mxu0 0.0
          %661 = vmatmul.mubr.f32.gmra.mrb[0].mxu0 %v442
          %v662 = vpop.f32.mrb[0].mxu0
          %v663 = vadd.f32 0.0, %v662
          %v664 = vpop.f32.mrb[0].mxu0
          %665 = vmatprep.mubr.f32.mxu0 0.0
          %666 = vmatmul.mubr.f32.gmra.mrb[0].mxu0 %v445
          %v667 = vpop.f32.mrb[0].mxu0
          %v668 = vadd.f32 0.0, %v667
          %v669 = vpop.f32.mrb[0].mxu0
          %670 = vmatprep.mubr.f32.mxu0 0.0
          %671 = vmatmul.mubr.f32.gmra.mrb[0].mxu0 %v448
          %v672 = vpop.f32.mrb[0].mxu0
          %v673 = vadd.f32 0.0, %v672
          %v674 = vpop.f32.mrb[0].mxu0
          %675 = vmatprep.mubr.f32.mxu0 0.0
          %676 = vmatmul.mubr.f32.gmra.mrb[0].mxu0 %v451
          %v677 = vpop.f32.mrb[0].mxu0
          %v678 = vadd.f32 0.0, %v677
          %v679 = vpop.f32.mrb[0].mxu0
          %680 = vdwg.mxu0
          %v681 = vld [vmem:[#allocation2] sm:$0xff]
          %v682 = vld [vmem:[#allocation2 + $0x8] sm:$0xff]
          %v683 = vld [vmem:[#allocation2 + $0x10] sm:$0xff]
          %v684 = vld [vmem:[#allocation2 + $0x18] sm:$0xff]
          %v685 = vld [vmem:[#allocation2 + $0x20] sm:$0xff]
          %v686 = vld [vmem:[#allocation2 + $0x28] sm:$0xff]
          %v687 = vld [vmem:[#allocation2 + $0x30] sm:$0xff]
          %v688 = vld [vmem:[#allocation2 + $0x38] sm:$0xff]
          %v689 = vld [vmem:[#allocation2 + $0x40] sm:$0xff]
          %v690 = vld [vmem:[#allocation2 + $0x48] sm:$0xff]
          %v691 = vld [vmem:[#allocation2 + $0x50] sm:$0xff]
          %v692 = vld [vmem:[#allocation2 + $0x58] sm:$0xff]
          %v693 = vld [vmem:[#allocation2 + $0x60] sm:$0xff]
          %v694 = vld [vmem:[#allocation2 + $0x68] sm:$0xff]
          %v695 = vld [vmem:[#allocation2 + $0x70] sm:$0xff]
          %v696 = vld [vmem:[#allocation2 + $0x78] sm:$0xff]
          %697 = vmatprep.subr.mxu0 0.0
          %698 = vmatpush1.xpose.msra.mxu0 %v523
          %699 = vmatprep.subr.mxu0 0.0
          %700 = vmatpush1.xpose.msra.mxu0 %v528
          %701 = vmatprep.subr.mxu0 0.0
          %702 = vmatpush1.xpose.msra.mxu0 %v533
          %703 = vmatprep.subr.mxu0 0.0
          %704 = vmatpush1.xpose.msra.mxu0 %v538
          %705 = vmatprep.subr.mxu0 0.0
          %706 = vmatpush1.xpose.msra.mxu0 0.0
          %707 = vmatprep.subr.mxu0 0.0
          %708 = vmatpush1.xpose.msra.mxu0 0.0
          %709 = vmatprep.subr.mxu0 0.0
          %710 = vmatpush1.xpose.msra.mxu0 0.0
          %711 = vmatprep.subr.mxu0 0.0
          %712 = vmatpush1.xpose.msra.mxu0 0.0
          %713 = vmatprep.subr.mxu0 0.0
          %714 = vmatpush1.xpose.msra.mxu0 0.0
          %715 = vmatprep.subr.mxu0 0.0
          %716 = vmatpush1.xpose.msra.mxu0 0.0
          %717 = vmatprep.subr.mxu0 0.0
          %718 = vmatpush1.xpose.msra.mxu0 0.0
          %719 = vmatprep.subr.mxu0 0.0
          %720 = vmatpush1.xpose.msra.mxu0 0.0
          %721 = vmatprep.subr.mxu0 0.0
          %722 = vmatpush1.xpose.msra.mxu0 0.0
          %723 = vmatprep.subr.mxu0 0.0
          %724 = vmatpush1.xpose.msra.mxu0 0.0
          %725 = vmatprep.subr.mxu0 0.0
          %726 = vmatpush1.xpose.msra.mxu0 0.0
          %727 = vmatprep.subr.mxu0 0.0
          %728 = vmatpush1.xpose.msra.mxu0 0.0
          %729 = vmatprep.subr.mxu0 0.0
          %730 = vmatpush1.xpose.msra.mxu0 0.0
          %731 = vmatprep.subr.mxu0 0.0
          %732 = vmatpush1.xpose.msra.mxu0 0.0
          %733 = vmatprep.subr.mxu0 0.0
          %734 = vmatpush1.xpose.msra.mxu0 0.0
          %735 = vmatprep.subr.mxu0 0.0
          %736 = vmatpush1.xpose.msra.mxu0 0.0
          %737 = vmatprep.subr.mxu0 0.0
          %738 = vmatpush1.xpose.msra.mxu0 0.0
          %739 = vmatprep.subr.mxu0 0.0
          %740 = vmatpush1.xpose.msra.mxu0 0.0
          %741 = vmatprep.subr.mxu0 0.0
          %742 = vmatpush1.xpose.msra.mxu0 0.0
          %743 = vmatprep.subr.mxu0 0.0
          %744 = vmatpush1.xpose.msra.mxu0 0.0
          %745 = vmatprep.subr.mxu0 0.0
          %746 = vmatpush1.xpose.msra.mxu0 0.0
          %747 = vmatprep.subr.mxu0 0.0
          %748 = vmatpush1.xpose.msra.mxu0 0.0
          %749 = vmatprep.subr.mxu0 0.0
          %750 = vmatpush1.xpose.msra.mxu0 0.0
          %751 = vmatprep.subr.mxu0 0.0
          %752 = vmatpush1.xpose.msra.mxu0 0.0
          %753 = vmatprep.subr.mxu0 0.0
          %754 = vmatpush1.xpose.msra.mxu0 0.0
          %755 = vmatprep.subr.mxu0 0.0
          %756 = vmatpush1.xpose.msra.mxu0 0.0
          %757 = vmatprep.subr.mxu0 0.0
          %758 = vmatpush1.xpose.msra.mxu0 0.0
          %759 = vmatprep.subr.mxu0 0.0
          %760 = vmatpush1.xpose.msra.mxu0 0.0
          %761 = vmatprep.mubr.f32.mxu0 0.0
          %762 = vmatmul.mubr.f32.gmra.mrb[0].mxu0 %v603
          %v763 = vpop.f32.mrb[0].mxu0
          %v764 = vadd.f32 0.0, %v763
          %v765 = vpop.f32.mrb[0].mxu0
          %766 = vmatprep.mubr.f32.mxu0 0.0
          %767 = vmatmul.mubr.f32.gmra.mrb[0].mxu0 %v608
          %v768 = vpop.f32.mrb[0].mxu0
          %v769 = vadd.f32 0.0, %v768
          %v770 = vpop.f32.mrb[0].mxu0
          %771 = vmatprep.mubr.f32.mxu0 0.0
          %772 = vmatmul.mubr.f32.gmra.mrb[0].mxu0 %v613
          %v773 = vpop.f32.mrb[0].mxu0
          %v774 = vadd.f32 0.0, %v773
          %v775 = vpop.f32.mrb[0].mxu0
          %776 = vmatprep.mubr.f32.mxu0 0.0
          %777 = vmatmul.mubr.f32.gmra.mrb[0].mxu0 %v618
          %v778 = vpop.f32.mrb[0].mxu0
          %v779 = vadd.f32 0.0, %v778
          %v780 = vpop.f32.mrb[0].mxu0
          %781 = vdwg.mxu0
          %782 = vmatprep.subr.mxu0 0.0
          %783 = vmatpush1.xpose.msra.mxu0 %v543
          %784 = vmatprep.subr.mxu0 0.0
          %785 = vmatpush1.xpose.msra.mxu0 %v548
          %786 = vmatprep.subr.mxu0 0.0
          %787 = vmatpush1.xpose.msra.mxu0 %v553
          %788 = vmatprep.subr.mxu0 0.0
          %789 = vmatpush1.xpose.msra.mxu0 %v558
          %790 = vmatprep.subr.mxu0 0.0
          %791 = vmatpush1.xpose.msra.mxu0 0.0
          %792 = vmatprep.subr.mxu0 0.0
          %793 = vmatpush1.xpose.msra.mxu0 0.0
          %794 = vmatprep.subr.mxu0 0.0
          %795 = vmatpush1.xpose.msra.mxu0 0.0
          %796 = vmatprep.subr.mxu0 0.0
          %797 = vmatpush1.xpose.msra.mxu0 0.0
          %798 = vmatprep.subr.mxu0 0.0
          %799 = vmatpush1.xpose.msra.mxu0 0.0
          %800 = vmatprep.subr.mxu0 0.0
          %801 = vmatpush1.xpose.msra.mxu0 0.0
          %802 = vmatprep.subr.mxu0 0.0
          %803 = vmatpush1.xpose.msra.mxu0 0.0
          %804 = vmatprep.subr.mxu0 0.0
          %805 = vmatpush1.xpose.msra.mxu0 0.0
          %806 = vmatprep.subr.mxu0 0.0
          %807 = vmatpush1.xpose.msra.mxu0 0.0
          %808 = vmatprep.subr.mxu0 0.0
          %809 = vmatpush1.xpose.msra.mxu0 0.0
          %810 = vmatprep.subr.mxu0 0.0
          %811 = vmatpush1.xpose.msra.mxu0 0.0
          %812 = vmatprep.subr.mxu0 0.0
          %813 = vmatpush1.xpose.msra.mxu0 0.0
          %814 = vmatprep.subr.mxu0 0.0
          %815 = vmatpush1.xpose.msra.mxu0 0.0
          %816 = vmatprep.subr.mxu0 0.0
          %817 = vmatpush1.xpose.msra.mxu0 0.0
          %818 = vmatprep.subr.mxu0 0.0
          %819 = vmatpush1.xpose.msra.mxu0 0.0
          %820 = vmatprep.subr.mxu0 0.0
          %821 = vmatpush1.xpose.msra.mxu0 0.0
          %822 = vmatprep.subr.mxu0 0.0
          %823 = vmatpush1.xpose.msra.mxu0 0.0
          %824 = vmatprep.subr.mxu0 0.0
          %825 = vmatpush1.xpose.msra.mxu0 0.0
          %826 = vmatprep.subr.mxu0 0.0
          %827 = vmatpush1.xpose.msra.mxu0 0.0
          %828 = vmatprep.subr.mxu0 0.0
          %829 = vmatpush1.xpose.msra.mxu0 0.0
          %830 = vmatprep.subr.mxu0 0.0
          %831 = vmatpush1.xpose.msra.mxu0 0.0
          %832 = vmatprep.subr.mxu0 0.0
          %833 = vmatpush1.xpose.msra.mxu0 0.0
          %834 = vmatprep.subr.mxu0 0.0
          %835 = vmatpush1.xpose.msra.mxu0 0.0
          %836 = vmatprep.subr.mxu0 0.0
          %837 = vmatpush1.xpose.msra.mxu0 0.0
          %838 = vmatprep.subr.mxu0 0.0
          %839 = vmatpush1.xpose.msra.mxu0 0.0
          %840 = vmatprep.subr.mxu0 0.0
          %841 = vmatpush1.xpose.msra.mxu0 0.0
          %842 = vmatprep.subr.mxu0 0.0
          %843 = vmatpush1.xpose.msra.mxu0 0.0
          %844 = vmatprep.subr.mxu0 0.0
          %845 = vmatpush1.xpose.msra.mxu0 0.0
          %846 = vmatprep.mubr.f32.mxu0 0.0
          %847 = vmatmul.mubr.f32.gmra.mrb[0].mxu0 %v623
          %v848 = vpop.f32.mrb[0].mxu0
          %v849 = vadd.f32 0.0, %v848
          %v850 = vpop.f32.mrb[0].mxu0
          %851 = vmatprep.mubr.f32.mxu0 0.0
          %852 = vmatmul.mubr.f32.gmra.mrb[0].mxu0 %v628
          %v853 = vpop.f32.mrb[0].mxu0
          %v854 = vadd.f32 0.0, %v853
          %v855 = vpop.f32.mrb[0].mxu0
          %856 = vmatprep.mubr.f32.mxu0 0.0
          %857 = vmatmul.mubr.f32.gmra.mrb[0].mxu0 %v633
          %v858 = vpop.f32.mrb[0].mxu0
          %v859 = vadd.f32 0.0, %v858
          %v860 = vpop.f32.mrb[0].mxu0
          %861 = vmatprep.mubr.f32.mxu0 0.0
          %862 = vmatmul.mubr.f32.gmra.mrb[0].mxu0 %v638
          %v863 = vpop.f32.mrb[0].mxu0
          %v864 = vadd.f32 0.0, %v863
          %v865 = vpop.f32.mrb[0].mxu0
          %866 = vdwg.mxu0
          %867 = vmatprep.subr.mxu0 0.0
          %868 = vmatpush1.xpose.msra.mxu0 %v563
          %869 = vmatprep.subr.mxu0 0.0
          %870 = vmatpush1.xpose.msra.mxu0 %v568
          %871 = vmatprep.subr.mxu0 0.0
          %872 = vmatpush1.xpose.msra.mxu0 %v573
          %873 = vmatprep.subr.mxu0 0.0
          %874 = vmatpush1.xpose.msra.mxu0 %v578
          %875 = vmatprep.subr.mxu0 0.0
          %876 = vmatpush1.xpose.msra.mxu0 0.0
          %877 = vmatprep.subr.mxu0 0.0
          %878 = vmatpush1.xpose.msra.mxu0 0.0
          %879 = vmatprep.subr.mxu0 0.0
          %880 = vmatpush1.xpose.msra.mxu0 0.0
          %881 = vmatprep.subr.mxu0 0.0
          %882 = vmatpush1.xpose.msra.mxu0 0.0
          %883 = vmatprep.subr.mxu0 0.0
          %884 = vmatpush1.xpose.msra.mxu0 0.0
          %885 = vmatprep.subr.mxu0 0.0
          %886 = vmatpush1.xpose.msra.mxu0 0.0
          %887 = vmatprep.subr.mxu0 0.0
          %888 = vmatpush1.xpose.msra.mxu0 0.0
          %889 = vmatprep.subr.mxu0 0.0
          %890 = vmatpush1.xpose.msra.mxu0 0.0
          %891 = vmatprep.subr.mxu0 0.0
          %892 = vmatpush1.xpose.msra.mxu0 0.0
          %893 = vmatprep.subr.mxu0 0.0
          %894 = vmatpush1.xpose.msra.mxu0 0.0
          %895 = vmatprep.subr.mxu0 0.0
          %896 = vmatpush1.xpose.msra.mxu0 0.0
          %897 = vmatprep.subr.mxu0 0.0
          %898 = vmatpush1.xpose.msra.mxu0 0.0
          %899 = vmatprep.subr.mxu0 0.0
          %900 = vmatpush1.xpose.msra.mxu0 0.0
          %901 = vmatprep.subr.mxu0 0.0
          %902 = vmatpush1.xpose.msra.mxu0 0.0
          %903 = vmatprep.subr.mxu0 0.0
          %904 = vmatpush1.xpose.msra.mxu0 0.0
          %905 = vmatprep.subr.mxu0 0.0
          %906 = vmatpush1.xpose.msra.mxu0 0.0
          %907 = vmatprep.subr.mxu0 0.0
          %908 = vmatpush1.xpose.msra.mxu0 0.0
          %909 = vmatprep.subr.mxu0 0.0
          %910 = vmatpush1.xpose.msra.mxu0 0.0
          %911 = vmatprep.subr.mxu0 0.0
          %912 = vmatpush1.xpose.msra.mxu0 0.0
          %913 = vmatprep.subr.mxu0 0.0
          %914 = vmatpush1.xpose.msra.mxu0 0.0
          %915 = vmatprep.subr.mxu0 0.0
          %916 = vmatpush1.xpose.msra.mxu0 0.0
          %917 = vmatprep.subr.mxu0 0.0
          %918 = vmatpush1.xpose.msra.mxu0 0.0
          %919 = vmatprep.subr.mxu0 0.0
          %920 = vmatpush1.xpose.msra.mxu0 0.0
          %921 = vmatprep.subr.mxu0 0.0
          %922 = vmatpush1.xpose.msra.mxu0 0.0
          %923 = vmatprep.subr.mxu0 0.0
          %924 = vmatpush1.xpose.msra.mxu0 0.0
          %925 = vmatprep.subr.mxu0 0.0
          %926 = vmatpush1.xpose.msra.mxu0 0.0
          %927 = vmatprep.subr.mxu0 0.0
          %928 = vmatpush1.xpose.msra.mxu0 0.0
          %929 = vmatprep.subr.mxu0 0.0
          %930 = vmatpush1.xpose.msra.mxu0 0.0
          %931 = vmatprep.mubr.f32.mxu0 0.0
          %932 = vmatmul.mubr.f32.gmra.mrb[0].mxu0 %v643
          %v933 = vpop.f32.mrb[0].mxu0
          %v934 = vadd.f32 0.0, %v933
          %v935 = vpop.f32.mrb[0].mxu0
          %936 = vmatprep.mubr.f32.mxu0 0.0
          %937 = vmatmul.mubr.f32.gmra.mrb[0].mxu0 %v648
          %v938 = vpop.f32.mrb[0].mxu0
          %v939 = vadd.f32 0.0, %v938
          %v940 = vpop.f32.mrb[0].mxu0
          %941 = vmatprep.mubr.f32.mxu0 0.0
          %942 = vmatmul.mubr.f32.gmra.mrb[0].mxu0 %v653
          %v943 = vpop.f32.mrb[0].mxu0
          %v944 = vadd.f32 0.0, %v943
          %v945 = vpop.f32.mrb[0].mxu0
          %946 = vmatprep.mubr.f32.mxu0 0.0
          %947 = vmatmul.mubr.f32.gmra.mrb[0].mxu0 %v658
          %v948 = vpop.f32.mrb[0].mxu0
          %v949 = vadd.f32 0.0, %v948
          %v950 = vpop.f32.mrb[0].mxu0
          %951 = vdwg.mxu0
          %952 = vmatprep.subr.mxu0 0.0
          %953 = vmatpush1.xpose.msra.mxu0 %v583
          %954 = vmatprep.subr.mxu0 0.0
          %955 = vmatpush1.xpose.msra.mxu0 %v588
          %956 = vmatprep.subr.mxu0 0.0
          %957 = vmatpush1.xpose.msra.mxu0 %v593
          %958 = vmatprep.subr.mxu0 0.0
          %959 = vmatpush1.xpose.msra.mxu0 %v598
          %960 = vmatprep.subr.mxu0 0.0
          %961 = vmatpush1.xpose.msra.mxu0 0.0
          %962 = vmatprep.subr.mxu0 0.0
          %963 = vmatpush1.xpose.msra.mxu0 0.0
          %964 = vmatprep.subr.mxu0 0.0
          %965 = vmatpush1.xpose.msra.mxu0 0.0
          %966 = vmatprep.subr.mxu0 0.0
          %967 = vmatpush1.xpose.msra.mxu0 0.0
          %968 = vmatprep.subr.mxu0 0.0
          %969 = vmatpush1.xpose.msra.mxu0 0.0
          %970 = vmatprep.subr.mxu0 0.0
          %971 = vmatpush1.xpose.msra.mxu0 0.0
          %972 = vmatprep.subr.mxu0 0.0
          %973 = vmatpush1.xpose.msra.mxu0 0.0
          %974 = vmatprep.subr.mxu0 0.0
          %975 = vmatpush1.xpose.msra.mxu0 0.0
          %976 = vmatprep.subr.mxu0 0.0
          %977 = vmatpush1.xpose.msra.mxu0 0.0
          %978 = vmatprep.subr.mxu0 0.0
          %979 = vmatpush1.xpose.msra.mxu0 0.0
          %980 = vmatprep.subr.mxu0 0.0
          %981 = vmatpush1.xpose.msra.mxu0 0.0
          %982 = vmatprep.subr.mxu0 0.0
          %983 = vmatpush1.xpose.msra.mxu0 0.0
          %984 = vmatprep.subr.mxu0 0.0
          %985 = vmatpush1.xpose.msra.mxu0 0.0
          %986 = vmatprep.subr.mxu0 0.0
          %987 = vmatpush1.xpose.msra.mxu0 0.0
          %988 = vmatprep.subr.mxu0 0.0
          %989 = vmatpush1.xpose.msra.mxu0 0.0
          %990 = vmatprep.subr.mxu0 0.0
          %991 = vmatpush1.xpose.msra.mxu0 0.0
          %992 = vmatprep.subr.mxu0 0.0
          %993 = vmatpush1.xpose.msra.mxu0 0.0
          %994 = vmatprep.subr.mxu0 0.0
          %995 = vmatpush1.xpose.msra.mxu0 0.0
          %996 = vmatprep.subr.mxu0 0.0
          %997 = vmatpush1.xpose.msra.mxu0 0.0
          %998 = vmatprep.subr.mxu0 0.0
          %999 = vmatpush1.xpose.msra.mxu0 0.0
          %1000 = vmatprep.subr.mxu0 0.0
          %1001 = vmatpush1.xpose.msra.mxu0 0.0
          %1002 = vmatprep.subr.mxu0 0.0
          %1003 = vmatpush1.xpose.msra.mxu0 0.0
          %1004 = vmatprep.subr.mxu0 0.0
          %1005 = vmatpush1.xpose.msra.mxu0 0.0
          %1006 = vmatprep.subr.mxu0 0.0
          %1007 = vmatpush1.xpose.msra.mxu0 0.0
          %1008 = vmatprep.subr.mxu0 0.0
          %1009 = vmatpush1.xpose.msra.mxu0 0.0
          %1010 = vmatprep.subr.mxu0 0.0
          %1011 = vmatpush1.xpose.msra.mxu0 0.0
          %1012 = vmatprep.subr.mxu0 0.0
          %1013 = vmatpush1.xpose.msra.mxu0 0.0
          %1014 = vmatprep.subr.mxu0 0.0
          %1015 = vmatpush1.xpose.msra.mxu0 0.0
          %1016 = vmatprep.mubr.f32.mxu0 0.0
          %1017 = vmatmul.mubr.f32.gmra.mrb[0].mxu0 %v663
          %v1018 = vpop.f32.mrb[0].mxu0
          %v1019 = vadd.f32 0.0, %v1018
          %v1020 = vpop.f32.mrb[0].mxu0
          %1021 = vmatprep.mubr.f32.mxu0 0.0
          %1022 = vmatmul.mubr.f32.gmra.mrb[0].mxu0 %v668
          %v1023 = vpop.f32.mrb[0].mxu0
          %v1024 = vadd.f32 0.0, %v1023
          %v1025 = vpop.f32.mrb[0].mxu0
          %1026 = vmatprep.mubr.f32.mxu0 0.0
          %1027 = vmatmul.mubr.f32.gmra.mrb[0].mxu0 %v673
          %v1028 = vpop.f32.mrb[0].mxu0
          %v1029 = vadd.f32 0.0, %v1028
          %v1030 = vpop.f32.mrb[0].mxu0
          %1031 = vmatprep.mubr.f32.mxu0 0.0
          %1032 = vmatmul.mubr.f32.gmra.mrb[0].mxu0 %v678
          %v1033 = vpop.f32.mrb[0].mxu0
          %v1034 = vadd.f32 0.0, %v1033
          %v1035 = vpop.f32.mrb[0].mxu0
          %1036 = vdwg.mxu0
          %v1037 = vadd.f32 %v681, %v764
          %v1038 = vadd.f32 %v682, %v769
          %v1039 = vadd.f32 %v683, %v774
          %v1040 = vadd.f32 %v684, %v779
          %v1041 = vadd.f32 %v685, %v849
          %v1042 = vadd.f32 %v686, %v854
          %v1043 = vadd.f32 %v687, %v859
          %v1044 = vadd.f32 %v688, %v864
          %v1045 = vadd.f32 %v689, %v934
          %v1046 = vadd.f32 %v690, %v939
          %v1047 = vadd.f32 %v691, %v944
          %v1048 = vadd.f32 %v692, %v949
          %v1049 = vadd.f32 %v693, %v1019
          %v1050 = vadd.f32 %v694, %v1024
          %v1051 = vadd.f32 %v695, %v1029
          %v1052 = vadd.f32 %v696, %v1034
          %vm1053 = vcmask 261120
          %1054 = vst.msk [vmem:[#allocation2] sm:$0xff] %vm1053, %v1037
          %1055 = vst.msk [vmem:[#allocation2 + $0x8] sm:$0xff] %vm1053, %v1038
          %1056 = vst.msk [vmem:[#allocation2 + $0x10] sm:$0xff] %vm1053, %v1039
          %1057 = vst.msk [vmem:[#allocation2 + $0x18] sm:$0xff] %vm1053, %v1040
          %1058 = vst.msk [vmem:[#allocation2 + $0x20] sm:$0xff] %vm1053, %v1041
          %1059 = vst.msk [vmem:[#allocation2 + $0x28] sm:$0xff] %vm1053, %v1042
          %1060 = vst.msk [vmem:[#allocation2 + $0x30] sm:$0xff] %vm1053, %v1043
          %1061 = vst.msk [vmem:[#allocation2 + $0x38] sm:$0xff] %vm1053, %v1044
          %1062 = vst.msk [vmem:[#allocation2 + $0x40] sm:$0xff] %vm1053, %v1045
          %1063 = vst.msk [vmem:[#allocation2 + $0x48] sm:$0xff] %vm1053, %v1046
          %1064 = vst.msk [vmem:[#allocation2 + $0x50] sm:$0xff] %vm1053, %v1047
          %1065 = vst.msk [vmem:[#allocation2 + $0x58] sm:$0xff] %vm1053, %v1048
          %1066 = vst.msk [vmem:[#allocation2 + $0x60] sm:$0xff] %vm1053, %v1049
          %1067 = vst.msk [vmem:[#allocation2 + $0x68] sm:$0xff] %vm1053, %v1050
          %1068 = vst.msk [vmem:[#allocation2 + $0x70] sm:$0xff] %vm1053, %v1051
          %1069 = vst.msk [vmem:[#allocation2 + $0x78] sm:$0xff] %vm1053, %v1052
        $region48: #{tpu_custom_call.1} parent=39 // pred_fallthru
          _
        %p1070 = scmp.eq.s32.totalorder %s25, 1
        // Predicated region
        $region49: #{tpu_custom_call.1} parent=39 // pred_check
          %p1071 = pneg %p1070
        $region50: #{tpu_custom_call.1} parent=39 // pred_check_branch
          %1073 = sbr.rel (%p1071) target = $region52
        $region51: #{tpu_custom_call.1} parent=39 // pred_region
          %vm1074 = vcmask 31744
          %v1076 = vsel %vm1074, %v305, 0
          %v1079 = vsel %vm1074, %v306, 0
          %v1082 = vsel %vm1074, %v307, 0
          %v1085 = vsel %vm1074, %v308, 0
          %v1088 = vsel %vm1074, %v309, 0
          %v1091 = vsel %vm1074, %v310, 0
          %v1094 = vsel %vm1074, %v311, 0
          %v1097 = vsel %vm1074, %v312, 0
          %v1100 = vsel %vm1074, %v313, 0
          %v1103 = vsel %vm1074, %v314, 0
          %v1106 = vsel %vm1074, %v315, 0
          %v1109 = vsel %vm1074, %v316, 0
          %v1112 = vsel %vm1074, %v317, 0
          %v1115 = vsel %vm1074, %v318, 0
          %v1118 = vsel %vm1074, %v319, 0
          %v1121 = vsel %vm1074, %v320, 0
          %v1124 = vsel %vm280, %v304, 0
          %1126 = vmatprep.subr.mxu0 0.0
          %1127 = vmatpush1.msra.mxu0 %v1124
          %1128 = vmatprep.subr.mxu0 0.0
          %1129 = vmatpush1.msra.mxu0 0.0
          %1130 = vmatprep.subr.mxu0 0.0
          %1131 = vmatpush1.msra.mxu0 0.0
          %1132 = vmatprep.subr.mxu0 0.0
          %1133 = vmatpush1.msra.mxu0 0.0
          %1134 = vmatprep.subr.mxu0 0.0
          %1135 = vmatpush1.msra.mxu0 0.0
          %1136 = vmatprep.subr.mxu0 0.0
          %1137 = vmatpush1.msra.mxu0 0.0
          %1138 = vmatprep.subr.mxu0 0.0
          %1139 = vmatpush1.msra.mxu0 0.0
          %1140 = vmatprep.subr.mxu0 0.0
          %1141 = vmatpush1.msra.mxu0 0.0
          %1142 = vmatprep.subr.mxu0 0.0
          %1143 = vmatpush1.msra.mxu0 0.0
          %1144 = vmatprep.subr.mxu0 0.0
          %1145 = vmatpush1.msra.mxu0 0.0
          %1146 = vmatprep.subr.mxu0 0.0
          %1147 = vmatpush1.msra.mxu0 0.0
          %1148 = vmatprep.subr.mxu0 0.0
          %1149 = vmatpush1.msra.mxu0 0.0
          %1150 = vmatprep.subr.mxu0 0.0
          %1151 = vmatpush1.msra.mxu0 0.0
          %1152 = vmatprep.subr.mxu0 0.0
          %1153 = vmatpush1.msra.mxu0 0.0
          %1154 = vmatprep.subr.mxu0 0.0
          %1155 = vmatpush1.msra.mxu0 0.0
          %1156 = vmatprep.subr.mxu0 0.0
          %1157 = vmatpush1.msra.mxu0 0.0
          %1158 = vmatprep.subr.mxu0 0.0
          %1159 = vmatpush1.msra.mxu0 0.0
          %1160 = vmatprep.subr.mxu0 0.0
          %1161 = vmatpush1.msra.mxu0 0.0
          %1162 = vmatprep.subr.mxu0 0.0
          %1163 = vmatpush1.msra.mxu0 0.0
          %1164 = vmatprep.subr.mxu0 0.0
          %1165 = vmatpush1.msra.mxu0 0.0
          %1166 = vmatprep.subr.mxu0 0.0
          %1167 = vmatpush1.msra.mxu0 0.0
          %1168 = vmatprep.subr.mxu0 0.0
          %1169 = vmatpush1.msra.mxu0 0.0
          %1170 = vmatprep.subr.mxu0 0.0
          %1171 = vmatpush1.msra.mxu0 0.0
          %1172 = vmatprep.subr.mxu0 0.0
          %1173 = vmatpush1.msra.mxu0 0.0
          %1174 = vmatprep.subr.mxu0 0.0
          %1175 = vmatpush1.msra.mxu0 0.0
          %1176 = vmatprep.subr.mxu0 0.0
          %1177 = vmatpush1.msra.mxu0 0.0
          %1178 = vmatprep.subr.mxu0 0.0
          %1179 = vmatpush1.msra.mxu0 0.0
          %1180 = vmatprep.subr.mxu0 0.0
          %1181 = vmatpush1.msra.mxu0 0.0
          %1182 = vmatprep.subr.mxu0 0.0
          %1183 = vmatpush1.msra.mxu0 0.0
          %1184 = vmatprep.subr.mxu0 0.0
          %1185 = vmatpush1.msra.mxu0 0.0
          %1186 = vmatprep.subr.mxu0 0.0
          %1187 = vmatpush1.msra.mxu0 0.0
          %1188 = vmatprep.subr.mxu0 0.0
          %1189 = vmatpush1.msra.mxu0 0.0
          %1190 = vmatprep.mubr.f32.mxu0 0.0
          %1191 = vmatmul.mubr.f32.gmra.mrb[0].mxu0 %v1076
          %v1192 = vpop.f32.mrb[0].mxu0
          %v1193 = vadd.f32 0.0, %v1192
          %v1194 = vpop.f32.mrb[0].mxu0
          %1195 = vmatprep.mubr.f32.mxu0 0.0
          %1196 = vmatmul.mubr.f32.gmra.mrb[0].mxu0 %v1079
          %v1197 = vpop.f32.mrb[0].mxu0
          %v1198 = vadd.f32 0.0, %v1197
          %v1199 = vpop.f32.mrb[0].mxu0
          %1200 = vmatprep.mubr.f32.mxu0 0.0
          %1201 = vmatmul.mubr.f32.gmra.mrb[0].mxu0 %v1082
          %v1202 = vpop.f32.mrb[0].mxu0
          %v1203 = vadd.f32 0.0, %v1202
          %v1204 = vpop.f32.mrb[0].mxu0
          %1205 = vmatprep.mubr.f32.mxu0 0.0
          %1206 = vmatmul.mubr.f32.gmra.mrb[0].mxu0 %v1085
          %v1207 = vpop.f32.mrb[0].mxu0
          %v1208 = vadd.f32 0.0, %v1207
          %v1209 = vpop.f32.mrb[0].mxu0
          %1210 = vmatprep.mubr.f32.mxu0 0.0
          %1211 = vmatmul.mubr.f32.gmra.mrb[0].mxu0 %v1088
          %v1212 = vpop.f32.mrb[0].mxu0
          %v1213 = vadd.f32 0.0, %v1212
          %v1214 = vpop.f32.mrb[0].mxu0
          %1215 = vmatprep.mubr.f32.mxu0 0.0
          %1216 = vmatmul.mubr.f32.gmra.mrb[0].mxu0 %v1091
          %v1217 = vpop.f32.mrb[0].mxu0
          %v1218 = vadd.f32 0.0, %v1217
          %v1219 = vpop.f32.mrb[0].mxu0
          %1220 = vmatprep.mubr.f32.mxu0 0.0
          %1221 = vmatmul.mubr.f32.gmra.mrb[0].mxu0 %v1094
          %v1222 = vpop.f32.mrb[0].mxu0
          %v1223 = vadd.f32 0.0, %v1222
          %v1224 = vpop.f32.mrb[0].mxu0
          %1225 = vmatprep.mubr.f32.mxu0 0.0
          %1226 = vmatmul.mubr.f32.gmra.mrb[0].mxu0 %v1097
          %v1227 = vpop.f32.mrb[0].mxu0
          %v1228 = vadd.f32 0.0, %v1227
          %v1229 = vpop.f32.mrb[0].mxu0
          %1230 = vmatprep.mubr.f32.mxu0 0.0
          %1231 = vmatmul.mubr.f32.gmra.mrb[0].mxu0 %v1100
          %v1232 = vpop.f32.mrb[0].mxu0
          %v1233 = vadd.f32 0.0, %v1232
          %v1234 = vpop.f32.mrb[0].mxu0
          %1235 = vmatprep.mubr.f32.mxu0 0.0
          %1236 = vmatmul.mubr.f32.gmra.mrb[0].mxu0 %v1103
          %v1237 = vpop.f32.mrb[0].mxu0
          %v1238 = vadd.f32 0.0, %v1237
          %v1239 = vpop.f32.mrb[0].mxu0
          %1240 = vmatprep.mubr.f32.mxu0 0.0
          %1241 = vmatmul.mubr.f32.gmra.mrb[0].mxu0 %v1106
          %v1242 = vpop.f32.mrb[0].mxu0
          %v1243 = vadd.f32 0.0, %v1242
          %v1244 = vpop.f32.mrb[0].mxu0
          %1245 = vmatprep.mubr.f32.mxu0 0.0
          %1246 = vmatmul.mubr.f32.gmra.mrb[0].mxu0 %v1109
          %v1247 = vpop.f32.mrb[0].mxu0
          %v1248 = vadd.f32 0.0, %v1247
          %v1249 = vpop.f32.mrb[0].mxu0
          %1250 = vmatprep.mubr.f32.mxu0 0.0
          %1251 = vmatmul.mubr.f32.gmra.mrb[0].mxu0 %v1112
          %v1252 = vpop.f32.mrb[0].mxu0
          %v1253 = vadd.f32 0.0, %v1252
          %v1254 = vpop.f32.mrb[0].mxu0
          %1255 = vmatprep.mubr.f32.mxu0 0.0
          %1256 = vmatmul.mubr.f32.gmra.mrb[0].mxu0 %v1115
          %v1257 = vpop.f32.mrb[0].mxu0
          %v1258 = vadd.f32 0.0, %v1257
          %v1259 = vpop.f32.mrb[0].mxu0
          %1260 = vmatprep.mubr.f32.mxu0 0.0
          %1261 = vmatmul.mubr.f32.gmra.mrb[0].mxu0 %v1118
          %v1262 = vpop.f32.mrb[0].mxu0
          %v1263 = vadd.f32 0.0, %v1262
          %v1264 = vpop.f32.mrb[0].mxu0
          %1265 = vmatprep.mubr.f32.mxu0 0.0
          %1266 = vmatmul.mubr.f32.gmra.mrb[0].mxu0 %v1121
          %v1267 = vpop.f32.mrb[0].mxu0
          %v1268 = vadd.f32 0.0, %v1267
          %v1269 = vpop.f32.mrb[0].mxu0
          %1270 = vdwg.mxu0
          %v1271 = vld [vmem:[#allocation2] sm:$0xff]
          %v1272 = vld [vmem:[#allocation2 + $0x8] sm:$0xff]
          %v1273 = vld [vmem:[#allocation2 + $0x10] sm:$0xff]
          %v1274 = vld [vmem:[#allocation2 + $0x18] sm:$0xff]
          %v1275 = vld [vmem:[#allocation2 + $0x20] sm:$0xff]
          %v1276 = vld [vmem:[#allocation2 + $0x28] sm:$0xff]
          %v1277 = vld [vmem:[#allocation2 + $0x30] sm:$0xff]
          %v1278 = vld [vmem:[#allocation2 + $0x38] sm:$0xff]
          %v1279 = vld [vmem:[#allocation2 + $0x40] sm:$0xff]
          %v1280 = vld [vmem:[#allocation2 + $0x48] sm:$0xff]
          %v1281 = vld [vmem:[#allocation2 + $0x50] sm:$0xff]
          %v1282 = vld [vmem:[#allocation2 + $0x58] sm:$0xff]
          %v1283 = vld [vmem:[#allocation2 + $0x60] sm:$0xff]
          %v1284 = vld [vmem:[#allocation2 + $0x68] sm:$0xff]
          %v1285 = vld [vmem:[#allocation2 + $0x70] sm:$0xff]
          %v1286 = vld [vmem:[#allocation2 + $0x78] sm:$0xff]
          %vm1287 = vcmask 261120
          %v1289 = vsel %vm1287, %v1271, 0
          %v1292 = vsel %vm1287, %v1272, 0
          %v1295 = vsel %vm1287, %v1273, 0
          %v1298 = vsel %vm1287, %v1274, 0
          %1300 = vmatprep.subr.mxu0 0.0
          %1301 = vmatpush1.msra.mxu0 %v1193
          %1302 = vmatprep.subr.mxu0 0.0
          %1303 = vmatpush1.msra.mxu0 %v1198
          %1304 = vmatprep.subr.mxu0 0.0
          %1305 = vmatpush1.msra.mxu0 %v1203
          %1306 = vmatprep.subr.mxu0 0.0
          %1307 = vmatpush1.msra.mxu0 %v1208
          %1308 = vmatprep.subr.mxu0 0.0
          %1309 = vmatpush1.msra.mxu0 0.0
          %1310 = vmatprep.subr.mxu0 0.0
          %1311 = vmatpush1.msra.mxu0 0.0
          %1312 = vmatprep.subr.mxu0 0.0
          %1313 = vmatpush1.msra.mxu0 0.0
          %1314 = vmatprep.subr.mxu0 0.0
          %1315 = vmatpush1.msra.mxu0 0.0
          %1316 = vmatprep.subr.mxu0 0.0
          %1317 = vmatpush1.msra.mxu0 0.0
          %1318 = vmatprep.subr.mxu0 0.0
          %1319 = vmatpush1.msra.mxu0 0.0
          %1320 = vmatprep.subr.mxu0 0.0
          %1321 = vmatpush1.msra.mxu0 0.0
          %1322 = vmatprep.subr.mxu0 0.0
          %1323 = vmatpush1.msra.mxu0 0.0
          %1324 = vmatprep.subr.mxu0 0.0
          %1325 = vmatpush1.msra.mxu0 0.0
          %1326 = vmatprep.subr.mxu0 0.0
          %1327 = vmatpush1.msra.mxu0 0.0
          %1328 = vmatprep.subr.mxu0 0.0
          %1329 = vmatpush1.msra.mxu0 0.0
          %1330 = vmatprep.subr.mxu0 0.0
          %1331 = vmatpush1.msra.mxu0 0.0
          %1332 = vmatprep.subr.mxu0 0.0
          %1333 = vmatpush1.msra.mxu0 0.0
          %1334 = vmatprep.subr.mxu0 0.0
          %1335 = vmatpush1.msra.mxu0 0.0
          %1336 = vmatprep.subr.mxu0 0.0
          %1337 = vmatpush1.msra.mxu0 0.0
          %1338 = vmatprep.subr.mxu0 0.0
          %1339 = vmatpush1.msra.mxu0 0.0
          %1340 = vmatprep.subr.mxu0 0.0
          %1341 = vmatpush1.msra.mxu0 0.0
          %1342 = vmatprep.subr.mxu0 0.0
          %1343 = vmatpush1.msra.mxu0 0.0
          %1344 = vmatprep.subr.mxu0 0.0
          %1345 = vmatpush1.msra.mxu0 0.0
          %1346 = vmatprep.subr.mxu0 0.0
          %1347 = vmatpush1.msra.mxu0 0.0
          %1348 = vmatprep.subr.mxu0 0.0
          %1349 = vmatpush1.msra.mxu0 0.0
          %1350 = vmatprep.subr.mxu0 0.0
          %1351 = vmatpush1.msra.mxu0 0.0
          %1352 = vmatprep.subr.mxu0 0.0
          %1353 = vmatpush1.msra.mxu0 0.0
          %1354 = vmatprep.subr.mxu0 0.0
          %1355 = vmatpush1.msra.mxu0 0.0
          %1356 = vmatprep.subr.mxu0 0.0
          %1357 = vmatpush1.msra.mxu0 0.0
          %1358 = vmatprep.subr.mxu0 0.0
          %1359 = vmatpush1.msra.mxu0 0.0
          %1360 = vmatprep.subr.mxu0 0.0
          %1361 = vmatpush1.msra.mxu0 0.0
          %1362 = vmatprep.subr.mxu0 0.0
          %1363 = vmatpush1.msra.mxu0 0.0
          %1364 = vmatprep.mubr.f32.mxu0 0.0
          %1365 = vmatmul.mubr.f32.gmra.mrb[0].mxu0 %v1289
          %v1366 = vpop.f32.mrb[0].mxu0
          %v1367 = vadd.f32 0.0, %v1366
          %v1368 = vpop.f32.mrb[0].mxu0
          %1369 = vmatprep.mubr.f32.mxu0 0.0
          %1370 = vmatmul.mubr.f32.gmra.mrb[0].mxu0 %v1292
          %v1371 = vpop.f32.mrb[0].mxu0
          %v1372 = vadd.f32 0.0, %v1371
          %v1373 = vpop.f32.mrb[0].mxu0
          %1374 = vmatprep.mubr.f32.mxu0 0.0
          %1375 = vmatmul.mubr.f32.gmra.mrb[0].mxu0 %v1295
          %v1376 = vpop.f32.mrb[0].mxu0
          %v1377 = vadd.f32 0.0, %v1376
          %v1378 = vpop.f32.mrb[0].mxu0
          %1379 = vmatprep.mubr.f32.mxu0 0.0
          %1380 = vmatmul.mubr.f32.gmra.mrb[0].mxu0 %v1298
          %v1381 = vpop.f32.mrb[0].mxu0
          %v1382 = vadd.f32 0.0, %v1381
          %v1383 = vpop.f32.mrb[0].mxu0
          %1384 = vdwg.mxu0
          %v1386 = vsel %vm1287, %v1275, 0
          %v1389 = vsel %vm1287, %v1276, 0
          %v1392 = vsel %vm1287, %v1277, 0
          %v1395 = vsel %vm1287, %v1278, 0
          %1397 = vmatprep.subr.mxu0 0.0
          %1398 = vmatpush1.msra.mxu0 %v1213
          %1399 = vmatprep.subr.mxu0 0.0
          %1400 = vmatpush1.msra.mxu0 %v1218
          %1401 = vmatprep.subr.mxu0 0.0
          %1402 = vmatpush1.msra.mxu0 %v1223
          %1403 = vmatprep.subr.mxu0 0.0
          %1404 = vmatpush1.msra.mxu0 %v1228
          %1405 = vmatprep.subr.mxu0 0.0
          %1406 = vmatpush1.msra.mxu0 0.0
          %1407 = vmatprep.subr.mxu0 0.0
          %1408 = vmatpush1.msra.mxu0 0.0
          %1409 = vmatprep.subr.mxu0 0.0
          %1410 = vmatpush1.msra.mxu0 0.0
          %1411 = vmatprep.subr.mxu0 0.0
          %1412 = vmatpush1.msra.mxu0 0.0
          %1413 = vmatprep.subr.mxu0 0.0
          %1414 = vmatpush1.msra.mxu0 0.0
          %1415 = vmatprep.subr.mxu0 0.0
          %1416 = vmatpush1.msra.mxu0 0.0
          %1417 = vmatprep.subr.mxu0 0.0
          %1418 = vmatpush1.msra.mxu0 0.0
          %1419 = vmatprep.subr.mxu0 0.0
          %1420 = vmatpush1.msra.mxu0 0.0
          %1421 = vmatprep.subr.mxu0 0.0
          %1422 = vmatpush1.msra.mxu0 0.0
          %1423 = vmatprep.subr.mxu0 0.0
          %1424 = vmatpush1.msra.mxu0 0.0
          %1425 = vmatprep.subr.mxu0 0.0
          %1426 = vmatpush1.msra.mxu0 0.0
          %1427 = vmatprep.subr.mxu0 0.0
          %1428 = vmatpush1.msra.mxu0 0.0
          %1429 = vmatprep.subr.mxu0 0.0
          %1430 = vmatpush1.msra.mxu0 0.0
          %1431 = vmatprep.subr.mxu0 0.0
          %1432 = vmatpush1.msra.mxu0 0.0
          %1433 = vmatprep.subr.mxu0 0.0
          %1434 = vmatpush1.msra.mxu0 0.0
          %1435 = vmatprep.subr.mxu0 0.0
          %1436 = vmatpush1.msra.mxu0 0.0
          %1437 = vmatprep.subr.mxu0 0.0
          %1438 = vmatpush1.msra.mxu0 0.0
          %1439 = vmatprep.subr.mxu0 0.0
          %1440 = vmatpush1.msra.mxu0 0.0
          %1441 = vmatprep.subr.mxu0 0.0
          %1442 = vmatpush1.msra.mxu0 0.0
          %1443 = vmatprep.subr.mxu0 0.0
          %1444 = vmatpush1.msra.mxu0 0.0
          %1445 = vmatprep.subr.mxu0 0.0
          %1446 = vmatpush1.msra.mxu0 0.0
          %1447 = vmatprep.subr.mxu0 0.0
          %1448 = vmatpush1.msra.mxu0 0.0
          %1449 = vmatprep.subr.mxu0 0.0
          %1450 = vmatpush1.msra.mxu0 0.0
          %1451 = vmatprep.subr.mxu0 0.0
          %1452 = vmatpush1.msra.mxu0 0.0
          %1453 = vmatprep.subr.mxu0 0.0
          %1454 = vmatpush1.msra.mxu0 0.0
          %1455 = vmatprep.subr.mxu0 0.0
          %1456 = vmatpush1.msra.mxu0 0.0
          %1457 = vmatprep.subr.mxu0 0.0
          %1458 = vmatpush1.msra.mxu0 0.0
          %1459 = vmatprep.subr.mxu0 0.0
          %1460 = vmatpush1.msra.mxu0 0.0
          %1461 = vmatprep.mubr.f32.mxu0 0.0
          %1462 = vmatmul.mubr.f32.gmra.mrb[0].mxu0 %v1386
          %v1463 = vpop.f32.mrb[0].mxu0
          %v1464 = vadd.f32 0.0, %v1463
          %v1465 = vpop.f32.mrb[0].mxu0
          %1466 = vmatprep.mubr.f32.mxu0 0.0
          %1467 = vmatmul.mubr.f32.gmra.mrb[0].mxu0 %v1389
          %v1468 = vpop.f32.mrb[0].mxu0
          %v1469 = vadd.f32 0.0, %v1468
          %v1470 = vpop.f32.mrb[0].mxu0
          %1471 = vmatprep.mubr.f32.mxu0 0.0
          %1472 = vmatmul.mubr.f32.gmra.mrb[0].mxu0 %v1392
          %v1473 = vpop.f32.mrb[0].mxu0
          %v1474 = vadd.f32 0.0, %v1473
          %v1475 = vpop.f32.mrb[0].mxu0
          %1476 = vmatprep.mubr.f32.mxu0 0.0
          %1477 = vmatmul.mubr.f32.gmra.mrb[0].mxu0 %v1395
          %v1478 = vpop.f32.mrb[0].mxu0
          %v1479 = vadd.f32 0.0, %v1478
          %v1480 = vpop.f32.mrb[0].mxu0
          %1481 = vdwg.mxu0
          %v1483 = vsel %vm1287, %v1279, 0
          %v1486 = vsel %vm1287, %v1280, 0
          %v1489 = vsel %vm1287, %v1281, 0
          %v1492 = vsel %vm1287, %v1282, 0
          %1494 = vmatprep.subr.mxu0 0.0
          %1495 = vmatpush1.msra.mxu0 %v1233
          %1496 = vmatprep.subr.mxu0 0.0
          %1497 = vmatpush1.msra.mxu0 %v1238
          %1498 = vmatprep.subr.mxu0 0.0
          %1499 = vmatpush1.msra.mxu0 %v1243
          %1500 = vmatprep.subr.mxu0 0.0
          %1501 = vmatpush1.msra.mxu0 %v1248
          %1502 = vmatprep.subr.mxu0 0.0
          %1503 = vmatpush1.msra.mxu0 0.0
          %1504 = vmatprep.subr.mxu0 0.0
          %1505 = vmatpush1.msra.mxu0 0.0
          %1506 = vmatprep.subr.mxu0 0.0
          %1507 = vmatpush1.msra.mxu0 0.0
          %1508 = vmatprep.subr.mxu0 0.0
          %1509 = vmatpush1.msra.mxu0 0.0
          %1510 = vmatprep.subr.mxu0 0.0
          %1511 = vmatpush1.msra.mxu0 0.0
          %1512 = vmatprep.subr.mxu0 0.0
          %1513 = vmatpush1.msra.mxu0 0.0
          %1514 = vmatprep.subr.mxu0 0.0
          %1515 = vmatpush1.msra.mxu0 0.0
          %1516 = vmatprep.subr.mxu0 0.0
          %1517 = vmatpush1.msra.mxu0 0.0
          %1518 = vmatprep.subr.mxu0 0.0
          %1519 = vmatpush1.msra.mxu0 0.0
          %1520 = vmatprep.subr.mxu0 0.0
          %1521 = vmatpush1.msra.mxu0 0.0
          %1522 = vmatprep.subr.mxu0 0.0
          %1523 = vmatpush1.msra.mxu0 0.0
          %1524 = vmatprep.subr.mxu0 0.0
          %1525 = vmatpush1.msra.mxu0 0.0
          %1526 = vmatprep.subr.mxu0 0.0
          %1527 = vmatpush1.msra.mxu0 0.0
          %1528 = vmatprep.subr.mxu0 0.0
          %1529 = vmatpush1.msra.mxu0 0.0
          %1530 = vmatprep.subr.mxu0 0.0
          %1531 = vmatpush1.msra.mxu0 0.0
          %1532 = vmatprep.subr.mxu0 0.0
          %1533 = vmatpush1.msra.mxu0 0.0
          %1534 = vmatprep.subr.mxu0 0.0
          %1535 = vmatpush1.msra.mxu0 0.0
          %1536 = vmatprep.subr.mxu0 0.0
          %1537 = vmatpush1.msra.mxu0 0.0
          %1538 = vmatprep.subr.mxu0 0.0
          %1539 = vmatpush1.msra.mxu0 0.0
          %1540 = vmatprep.subr.mxu0 0.0
          %1541 = vmatpush1.msra.mxu0 0.0
          %1542 = vmatprep.subr.mxu0 0.0
          %1543 = vmatpush1.msra.mxu0 0.0
          %1544 = vmatprep.subr.mxu0 0.0
          %1545 = vmatpush1.msra.mxu0 0.0
          %1546 = vmatprep.subr.mxu0 0.0
          %1547 = vmatpush1.msra.mxu0 0.0
          %1548 = vmatprep.subr.mxu0 0.0
          %1549 = vmatpush1.msra.mxu0 0.0
          %1550 = vmatprep.subr.mxu0 0.0
          %1551 = vmatpush1.msra.mxu0 0.0
          %1552 = vmatprep.subr.mxu0 0.0
          %1553 = vmatpush1.msra.mxu0 0.0
          %1554 = vmatprep.subr.mxu0 0.0
          %1555 = vmatpush1.msra.mxu0 0.0
          %1556 = vmatprep.subr.mxu0 0.0
          %1557 = vmatpush1.msra.mxu0 0.0
          %1558 = vmatprep.mubr.f32.mxu0 0.0
          %1559 = vmatmul.mubr.f32.gmra.mrb[0].mxu0 %v1483
          %v1560 = vpop.f32.mrb[0].mxu0
          %v1561 = vadd.f32 0.0, %v1560
          %v1562 = vpop.f32.mrb[0].mxu0
          %1563 = vmatprep.mubr.f32.mxu0 0.0
          %1564 = vmatmul.mubr.f32.gmra.mrb[0].mxu0 %v1486
          %v1565 = vpop.f32.mrb[0].mxu0
          %v1566 = vadd.f32 0.0, %v1565
          %v1567 = vpop.f32.mrb[0].mxu0
          %1568 = vmatprep.mubr.f32.mxu0 0.0
          %1569 = vmatmul.mubr.f32.gmra.mrb[0].mxu0 %v1489
          %v1570 = vpop.f32.mrb[0].mxu0
          %v1571 = vadd.f32 0.0, %v1570
          %v1572 = vpop.f32.mrb[0].mxu0
          %1573 = vmatprep.mubr.f32.mxu0 0.0
          %1574 = vmatmul.mubr.f32.gmra.mrb[0].mxu0 %v1492
          %v1575 = vpop.f32.mrb[0].mxu0
          %v1576 = vadd.f32 0.0, %v1575
          %v1577 = vpop.f32.mrb[0].mxu0
          %1578 = vdwg.mxu0
          %v1580 = vsel %vm1287, %v1283, 0
          %v1583 = vsel %vm1287, %v1284, 0
          %v1586 = vsel %vm1287, %v1285, 0
          %v1589 = vsel %vm1287, %v1286, 0
          %1591 = vmatprep.subr.mxu0 0.0
          %1592 = vmatpush1.msra.mxu0 %v1253
          %1593 = vmatprep.subr.mxu0 0.0
          %1594 = vmatpush1.msra.mxu0 %v1258
          %1595 = vmatprep.subr.mxu0 0.0
          %1596 = vmatpush1.msra.mxu0 %v1263
          %1597 = vmatprep.subr.mxu0 0.0
          %1598 = vmatpush1.msra.mxu0 %v1268
          %1599 = vmatprep.subr.mxu0 0.0
          %1600 = vmatpush1.msra.mxu0 0.0
          %1601 = vmatprep.subr.mxu0 0.0
          %1602 = vmatpush1.msra.mxu0 0.0
          %1603 = vmatprep.subr.mxu0 0.0
          %1604 = vmatpush1.msra.mxu0 0.0
          %1605 = vmatprep.subr.mxu0 0.0
          %1606 = vmatpush1.msra.mxu0 0.0
          %1607 = vmatprep.subr.mxu0 0.0
          %1608 = vmatpush1.msra.mxu0 0.0
          %1609 = vmatprep.subr.mxu0 0.0
          %1610 = vmatpush1.msra.mxu0 0.0
          %1611 = vmatprep.subr.mxu0 0.0
          %1612 = vmatpush1.msra.mxu0 0.0
          %1613 = vmatprep.subr.mxu0 0.0
          %1614 = vmatpush1.msra.mxu0 0.0
          %1615 = vmatprep.subr.mxu0 0.0
          %1616 = vmatpush1.msra.mxu0 0.0
          %1617 = vmatprep.subr.mxu0 0.0
          %1618 = vmatpush1.msra.mxu0 0.0
          %1619 = vmatprep.subr.mxu0 0.0
          %1620 = vmatpush1.msra.mxu0 0.0
          %1621 = vmatprep.subr.mxu0 0.0
          %1622 = vmatpush1.msra.mxu0 0.0
          %1623 = vmatprep.subr.mxu0 0.0
          %1624 = vmatpush1.msra.mxu0 0.0
          %1625 = vmatprep.subr.mxu0 0.0
          %1626 = vmatpush1.msra.mxu0 0.0
          %1627 = vmatprep.subr.mxu0 0.0
          %1628 = vmatpush1.msra.mxu0 0.0
          %1629 = vmatprep.subr.mxu0 0.0
          %1630 = vmatpush1.msra.mxu0 0.0
          %1631 = vmatprep.subr.mxu0 0.0
          %1632 = vmatpush1.msra.mxu0 0.0
          %1633 = vmatprep.subr.mxu0 0.0
          %1634 = vmatpush1.msra.mxu0 0.0
          %1635 = vmatprep.subr.mxu0 0.0
          %1636 = vmatpush1.msra.mxu0 0.0
          %1637 = vmatprep.subr.mxu0 0.0
          %1638 = vmatpush1.msra.mxu0 0.0
          %1639 = vmatprep.subr.mxu0 0.0
          %1640 = vmatpush1.msra.mxu0 0.0
          %1641 = vmatprep.subr.mxu0 0.0
          %1642 = vmatpush1.msra.mxu0 0.0
          %1643 = vmatprep.subr.mxu0 0.0
          %1644 = vmatpush1.msra.mxu0 0.0
          %1645 = vmatprep.subr.mxu0 0.0
          %1646 = vmatpush1.msra.mxu0 0.0
          %1647 = vmatprep.subr.mxu0 0.0
          %1648 = vmatpush1.msra.mxu0 0.0
          %1649 = vmatprep.subr.mxu0 0.0
          %1650 = vmatpush1.msra.mxu0 0.0
          %1651 = vmatprep.subr.mxu0 0.0
          %1652 = vmatpush1.msra.mxu0 0.0
          %1653 = vmatprep.subr.mxu0 0.0
          %1654 = vmatpush1.msra.mxu0 0.0
          %1655 = vmatprep.mubr.f32.mxu0 0.0
          %1656 = vmatmul.mubr.f32.gmra.mrb[0].mxu0 %v1580
          %v1657 = vpop.f32.mrb[0].mxu0
          %v1658 = vadd.f32 0.0, %v1657
          %v1659 = vpop.f32.mrb[0].mxu0
          %1660 = vmatprep.mubr.f32.mxu0 0.0
          %1661 = vmatmul.mubr.f32.gmra.mrb[0].mxu0 %v1583
          %v1662 = vpop.f32.mrb[0].mxu0
          %v1663 = vadd.f32 0.0, %v1662
          %v1664 = vpop.f32.mrb[0].mxu0
          %1665 = vmatprep.mubr.f32.mxu0 0.0
          %1666 = vmatmul.mubr.f32.gmra.mrb[0].mxu0 %v1586
          %v1667 = vpop.f32.mrb[0].mxu0
          %v1668 = vadd.f32 0.0, %v1667
          %v1669 = vpop.f32.mrb[0].mxu0
          %1670 = vmatprep.mubr.f32.mxu0 0.0
          %1671 = vmatmul.mubr.f32.gmra.mrb[0].mxu0 %v1589
          %v1672 = vpop.f32.mrb[0].mxu0
          %v1673 = vadd.f32 0.0, %v1672
          %v1674 = vpop.f32.mrb[0].mxu0
          %1675 = vdwg.mxu0
          %v1676 = vld [vmem:[%s3] sm:$0xf]
          %v1677 = vld [vmem:[%s4] sm:$0xf]
          %1679 = vset.pattern.permute.xlu0 0
          %1680 = vperm.xlu0 %1679, %v1677
          %v1681 = vpop.permute.xlu0 %1680
          %1683 = vmatprep.subr.mxu0 0.0
          %1684 = vmatpush1.msra.mxu0 %v1367
          %1685 = vmatprep.subr.mxu0 0.0
          %1686 = vmatpush1.msra.mxu0 %v1372
          %1687 = vmatprep.subr.mxu0 0.0
          %1688 = vmatpush1.msra.mxu0 %v1377
          %1689 = vmatprep.subr.mxu0 0.0
          %1690 = vmatpush1.msra.mxu0 %v1382
          %1691 = vmatprep.subr.mxu0 0.0
          %1692 = vmatpush1.msra.mxu0 %v1464
          %1693 = vmatprep.subr.mxu0 0.0
          %1694 = vmatpush1.msra.mxu0 %v1469
          %1695 = vmatprep.subr.mxu0 0.0
          %1696 = vmatpush1.msra.mxu0 %v1474
          %1697 = vmatprep.subr.mxu0 0.0
          %1698 = vmatpush1.msra.mxu0 %v1479
          %1699 = vmatprep.subr.mxu0 0.0
          %1700 = vmatpush1.msra.mxu0 %v1561
          %1701 = vmatprep.subr.mxu0 0.0
          %1702 = vmatpush1.msra.mxu0 %v1566
          %1703 = vmatprep.subr.mxu0 0.0
          %1704 = vmatpush1.msra.mxu0 %v1571
          %1705 = vmatprep.subr.mxu0 0.0
          %1706 = vmatpush1.msra.mxu0 %v1576
          %1707 = vmatprep.subr.mxu0 0.0
          %1708 = vmatpush1.msra.mxu0 %v1658
          %1709 = vmatprep.subr.mxu0 0.0
          %1710 = vmatpush1.msra.mxu0 %v1663
          %1711 = vmatprep.subr.mxu0 0.0
          %1712 = vmatpush1.msra.mxu0 %v1668
          %1713 = vmatprep.subr.mxu0 0.0
          %1714 = vmatpush1.msra.mxu0 %v1673
          %1715 = vmatprep.subr.mxu0 0.0
          %1716 = vmatpush1.msra.mxu0 0.0
          %1717 = vmatprep.subr.mxu0 0.0
          %1718 = vmatpush1.msra.mxu0 0.0
          %1719 = vmatprep.subr.mxu0 0.0
          %1720 = vmatpush1.msra.mxu0 0.0
          %1721 = vmatprep.subr.mxu0 0.0
          %1722 = vmatpush1.msra.mxu0 0.0
          %1723 = vmatprep.subr.mxu0 0.0
          %1724 = vmatpush1.msra.mxu0 0.0
          %1725 = vmatprep.subr.mxu0 0.0
          %1726 = vmatpush1.msra.mxu0 0.0
          %1727 = vmatprep.subr.mxu0 0.0
          %1728 = vmatpush1.msra.mxu0 0.0
          %1729 = vmatprep.subr.mxu0 0.0
          %1730 = vmatpush1.msra.mxu0 0.0
          %1731 = vmatprep.subr.mxu0 0.0
          %1732 = vmatpush1.msra.mxu0 0.0
          %1733 = vmatprep.subr.mxu0 0.0
          %1734 = vmatpush1.msra.mxu0 0.0
          %1735 = vmatprep.subr.mxu0 0.0
          %1736 = vmatpush1.msra.mxu0 0.0
          %1737 = vmatprep.subr.mxu0 0.0
          %1738 = vmatpush1.msra.mxu0 0.0
          %1739 = vmatprep.subr.mxu0 0.0
          %1740 = vmatpush1.msra.mxu0 0.0
          %1741 = vmatprep.subr.mxu0 0.0
          %1742 = vmatpush1.msra.mxu0 0.0
          %1743 = vmatprep.subr.mxu0 0.0
          %1744 = vmatpush1.msra.mxu0 0.0
          %1745 = vmatprep.subr.mxu0 0.0
          %1746 = vmatpush1.msra.mxu0 0.0
          %1747 = vmatprep.mubr.f32.mxu0 0.0
          %1748 = vmatmul.mubr.f32.gmra.mrb[0].mxu0 %v1676
          %v1749 = vpop.f32.mrb[0].mxu0
          %v1750 = vadd.f32 %v1681, %v1749
          %v1751 = vpop.f32.mrb[0].mxu0
          %1752 = vdwg.mxu0
          %v1753 = vadd.f32 %v1750, %v278
          %1754 = vst [vmem:[%s246] sm:$0xf] %v1753
        $region52: #{tpu_custom_call.1} parent=39 // pred_fallthru
          _
        %s1755 = sand.u32 %s162, 1
        %s1756 = scalar_lea.sflag [#allocation4], %s1755
        %s1757 = sand.u32 %s162, 1
        %s1758 = smul.addr %s1757, 4
        %s1759 = scalar_lea.vmem [#allocation3], %s1758
        // Predicated region
        $region53: #{tpu_custom_call.1} parent=39 // pred_check
          %p1760 = pneg %p172
        $region54: #{tpu_custom_call.1} parent=39 // pred_check_branch
          %1762 = sbr.rel (%p1760) target = $region56
        $region55: #{tpu_custom_call.1} parent=39 // pred_region
          %s1763 = smul.u32 %s26, %s25
          %s1765 = ssub.s32 64, 64
          %1766 = vsyncadd %s1756, %s1765
          %s1767 = sadd.s32 %s1763, %s24
          %s1768 = smul.addr %s1767, 64
          %s1769 = scalar_lea.hbm %s5, %s1768
          %s1771 = sshll.u32 %s1759, 4
          %s1772 = int_to_ptr.vmem [resolvable:$true] %s1771
          %1774 = dma.vmem_to_hbm [thread:$0]  %s1772, 64, %s1769, %s1756
        $region56: #{tpu_custom_call.1} parent=39 // pred_fallthru
          _
      $region40: #{tpu_custom_call.1} parent=5 // pred_fallthru
        _
      %p1775 = scmp.le.s32.totalorder 2, %s14
      // Predicated region
      $region57: #{tpu_custom_call.1} parent=5 // pred_check
        %p1776 = pneg %p1775
      $region58: #{tpu_custom_call.1} parent=5 // pred_check_branch
        %1778 = sbr.rel (%p1776) target = $region60
      $region59: #{tpu_custom_call.1} parent=5 // pred_region
        %s1779 = ssub.s32 %s14, 2
        // Predicated region
        $region61: #{tpu_custom_call.1} parent=59 // pred_check
          %p1780 = pneg %p178
        $region62: #{tpu_custom_call.1} parent=59 // pred_check_branch
          %1782 = sbr.rel (%p1780) target = $region64
        $region63: #{tpu_custom_call.1} parent=59 // pred_region
          %s1783 = sand.u32 %s163, 1
          %s1784 = scalar_lea.sflag [#allocation4], %s1783
          %s1785 = sand.u32 %s163, 1
          %s1786 = smul.addr %s1785, 4
          %s1787 = scalar_lea.vmem [#allocation3], %s1786
          %1788 = dma.done %s1784, 64
        $region64: #{tpu_custom_call.1} parent=59 // pred_fallthru
          _
      $region60: #{tpu_custom_call.1} parent=5 // pred_fallthru
        _
    $region6: #{tpu_custom_call.1} parent=1 // loop_footer
      %s18 = sadd.s32 1, %s14
    $region7: #{tpu_custom_call.1} parent=1 // loop_footer_branch
      %13 = sbr.rel target = $region3
    $region8: #{tpu_custom_call.1} parent=1 // loop_exit
      _
    %1789 = vsyncpa [#allocation4], 1
    %s1790 = scalar_lea.sflag [#allocation4], 1
    %1791 = vsyncpa %s1790, 1

</llo_original>
